<compile_context>
chip_gen: v7x
topology: tpu7x:2x2x1
jax: 0.10.0
libtpu: 0.0.40
codegen_flags: <defaults>
</compile_context>

<pallas_src>
import functools

import jax
import jax.numpy as jnp
from jax import lax
from jax.experimental import pallas as pl
from jax.experimental.pallas import tpu as pltpu

_INV_SQRT2 = 0.7071067811865476
_SQRT_2_OVER_PI = 0.7978845608028654


def _connector_kernel(x_ref, w1_ref, b1_ref, w2_ref, b2_ref, o_ref, *,
                      approximate_gelu):
    # x_ref : (Cin, TN)   one batch element, TN spatial columns (lane axis)
    # w1_ref: (256, Cin)  bf16 (resident)
    # b1_ref: (256, 1)    f32  (resident)
    # w2_ref: (768, 256)  bf16 (resident)
    # b2_ref: (768, 1)    f32  (resident)
    # o_ref : (768, TN)
    x = x_ref[...]
    if x.dtype != jnp.bfloat16:            # static (trace-time) dtype check
        x = x.astype(jnp.bfloat16)
    h = jnp.dot(w1_ref[...], x, preferred_element_type=jnp.float32) + b1_ref[...]
    if approximate_gelu:
        # tanh approximation — transcendental runs on the EUP (separate VLIW slot).
        h = 0.5 * h * (1.0 + jnp.tanh(_SQRT_2_OVER_PI * (h + 0.044715 * h * h * h)))
    else:
        # Exact erf, matching torch.nn.GELU() default.
        h = 0.5 * h * (1.0 + lax.erf(h * _INV_SQRT2))
    o = jnp.dot(w2_ref[...], h.astype(jnp.bfloat16),
                preferred_element_type=jnp.float32) + b2_ref[...]
    o_ref[...] = o.astype(o_ref.dtype)


def _pick_tile_n(n, target=1024):
    """Lane-axis (H*W) tile.  `target` is a multiple of 128; for N > target the
    ragged tail is handled by the cdiv grid + Pallas boundary masking, which is
    legal for any N (the (8,128) constraint is on the block shape, not on N)."""
    return n if n <= target else target


def connector_pallas(x_cols, w1, b1, w2, b2, *, tile_n=None,
                     out_dtype=jnp.float32, approximate_gelu=False):
    """x_cols: (B, Cin, N) with N = H*W.  Returns (B, 768, N) in `out_dtype`."""
    B, Cin, N = x_cols.shape
    C_mid = w1.shape[0]
    C_out = w2.shape[0]
    if tile_n is None:
        tile_n = _pick_tile_n(N)
    n_tiles = pl.cdiv(N, tile_n)

    # Weights as bf16 MXU operands (no-op if the caller already cached bf16).
    w1b = w1 if w1.dtype == jnp.bfloat16 else w1.astype(jnp.bfloat16)
    w2b = w2 if w2.dtype == jnp.bfloat16 else w2.astype(jnp.bfloat16)
    b1f = b1.astype(jnp.float32)
    b2f = b2.astype(jnp.float32)

    # Put the LARGER parallel axis first so a small-B grid still splits evenly
    # across the 2 TensorCores on v7x (both axes are 'parallel', either order is
    # correct; v5e/v6e are single-TC so this is neutral there).
    if n_tiles >= B:
        grid = (n_tiles, B)
        act_map = lambda n, b: (b, 0, n)
    else:
        grid = (B, n_tiles)
        act_map = lambda b, n: (b, 0, n)
    res_map = lambda i, j: (0, 0)

    x_bytes = x_cols.dtype.itemsize
    o_bytes = jnp.dtype(out_dtype).itemsize
    cost = pl.CostEstimate(
        flops=2 * B * N * (Cin * C_mid + C_mid * C_out),
        transcendentals=(B * N * C_mid) if approximate_gelu else 0,
        bytes_accessed=(B * Cin * N * x_bytes + B * C_out * N * o_bytes
                        + C_mid * Cin * 2 + C_out * C_mid * 2
                        + C_mid * 4 + C_out * 4),
    )

    kernel = functools.partial(_connector_kernel,
                               approximate_gelu=approximate_gelu)

    return pl.pallas_call(
        kernel,
        out_shape=jax.ShapeDtypeStruct((B, C_out, N), out_dtype),
        grid_spec=pltpu.PrefetchScalarGridSpec(
            num_scalar_prefetch=0,
            grid=grid,
            in_specs=[
                pl.BlockSpec((pl.Squeezed(), Cin, tile_n), act_map),
                pl.BlockSpec((C_mid, Cin), res_map),    # resident weights
                pl.BlockSpec((C_mid, 1), res_map),      # resident bias
                pl.BlockSpec((C_out, C_mid), res_map),  # resident weights
                pl.BlockSpec((C_out, 1), res_map),      # resident bias
            ],
            out_specs=pl.BlockSpec((pl.Squeezed(), C_out, tile_n), act_map),
        ),
        compiler_params=pltpu.CompilerParams(
            dimension_semantics=("parallel", "parallel"),
            # ~20 MiB worst-case working set at tile_n=1024 / Cin=1024; 48 MiB is
            # below v7x's 64 MiB physical VMEM and raises the v5e/v6e defaults.
            vmem_limit_bytes=48 << 20),
        cost_estimate=cost,
    )(x_cols, w1b, b1f, w2b, b2f)


def backbone_forward(x_nchw, params, *, out_dtype=jnp.float32,
                     approximate_gelu=False):
    """Backbone.forward: backbone(x) -> connector(x).  x_nchw: (B, Cin, H, W)."""
    # TODO(synk): `backbone` is an injected nn.Module with no architecture defined
    # in the reference file; it is treated as identity here.
    B, Cin, H, W = x_nchw.shape
    x_cols = x_nchw.reshape(B, Cin, H * W)           # pure view, no transpose
    y_cols = connector_pallas(x_cols, params["w1"], params["b1"],
                              params["w2"], params["b2"],
                              out_dtype=out_dtype,
                              approximate_gelu=approximate_gelu)
    C_out = params["w2"].shape[0]
    return y_cols.reshape(B, C_out, H, W)            # still NCHW, pure view


def init_params(hidden_dim, key):
    """Deterministic connector weights in torch Conv2d layout:
    Conv2d(hidden_dim, 256, 1).weight[:, :, 0, 0] -> (256, hidden_dim), bias -> (256, 1)."""
    k1, k2, k3, k4 = jax.random.split(key, 4)
    w1 = jax.random.normal(k1, (256, hidden_dim), jnp.float32) * 0.02
    b1 = jax.random.normal(k2, (256, 1), jnp.float32) * 0.02
    w2 = jax.random.normal(k3, (768, 256), jnp.float32) * 0.02
    b2 = jax.random.normal(k4, (768, 1), jnp.float32) * 0.02
    return {"w1": w1, "b1": b1, "w2": w2, "b2": b2}


if __name__ == "__main__":
    key = jax.random.PRNGKey(0)
    kx, kp = jax.random.split(key)

    B, hidden_dim, H, W = 2, 32, 16, 16          # H*W = 256 -> lane-aligned tile
    x = jax.random.normal(kx, (B, hidden_dim, H, W), jnp.float32)
    params = init_params(hidden_dim, kp)

    # Cast/cache bf16 MXU weights ONCE outside the per-call wrapper.
    params_run = {"w1": params["w1"].astype(jnp.bfloat16), "b1": params["b1"],
                  "w2": params["w2"].astype(jnp.bfloat16), "b2": params["b2"]}

    y = jax.block_until_ready(backbone_forward(x, params_run))
    assert y.shape == (B, 768, H, W), y.shape

    # Plain-JAX f32 reference (1x1 convs == per-pixel channel matmuls, exact GELU).
    xc = x.reshape(B, hidden_dim, H * W)
    h = jnp.einsum("oc,bcn->bon", params["w1"], xc) + params["b1"][None]
    h = 0.5 * h * (1.0 + lax.erf(h * _INV_SQRT2))
    ref = jnp.einsum("oc,bcn->bon", params["w2"], h) + params["b2"][None]
    ref = ref.reshape(B, 768, H, W)
    # Kernel uses bf16 MXU operands with f32 accumulation -> relaxed tolerance vs f32.
    assert jnp.allclose(y, ref, atol=1e-2, rtol=1e-2), float(jnp.max(jnp.abs(y - ref)))

    print("KERNEL_OK")
</pallas_src>

<mosaic_0001>
module attributes {stable_mosaic.version = 11 : i64} {
  func.func @_connector_kernel(%arg0: i32, %arg1: i32, %arg2: memref<1x32x256xf32, #tpu.memory_space<vmem>>, %arg3: memref<256x32xbf16, #tpu.memory_space<vmem>>, %arg4: memref<256x1xf32, #tpu.memory_space<vmem>>, %arg5: memref<768x256xbf16, #tpu.memory_space<vmem>>, %arg6: memref<768x1xf32, #tpu.memory_space<vmem>>, %arg7: memref<1x768x256xf32, #tpu.memory_space<vmem>>) attributes {dimension_semantics = [#tpu.dimension_semantics<parallel>, #tpu.dimension_semantics<parallel>], iteration_bounds = array<i64: 2, 1>, scalar_prefetch = 0 : i64, scratch_operands = 0 : i64, tpu.core_type = #tpu.core_type<tc>, window_params = [{transform_indices = @transform_0, window_bounds = array<i64: 1, 32, 256>}, {pipeline_mode = #tpu.pipeline_mode<synchronous>, transform_indices = @transform_1, window_bounds = array<i64: 256, 32>}, {pipeline_mode = #tpu.pipeline_mode<synchronous>, transform_indices = @transform_2, window_bounds = array<i64: 256, 1>}, {pipeline_mode = #tpu.pipeline_mode<synchronous>, transform_indices = @transform_3, window_bounds = array<i64: 768, 256>}, {pipeline_mode = #tpu.pipeline_mode<synchronous>, transform_indices = @transform_4, window_bounds = array<i64: 768, 1>}, {transform_indices = @transform_5, window_bounds = array<i64: 1, 768, 256>}]} {
    %c0 = arith.constant 0 : index
    %c0_0 = arith.constant 0 : index
    %c0_1 = arith.constant 0 : index
    %0 = vector.load %arg2[%c0, %c0_0, %c0_1] : memref<1x32x256xf32, #tpu.memory_space<vmem>>, vector<1x32x256xf32>
    %1 = vector.shape_cast %0 : vector<1x32x256xf32> to vector<32x256xf32>
    %2 = arith.truncf %1 : vector<32x256xf32> to vector<32x256xbf16>
    %c0_2 = arith.constant 0 : index
    %c0_3 = arith.constant 0 : index
    %3 = vector.load %arg3[%c0_2, %c0_3] : memref<256x32xbf16, #tpu.memory_space<vmem>>, vector<256x32xbf16>
    %cst = arith.constant dense<0.000000e+00> : vector<256x256xf32>
    %4 = tpu.matmul %3, %2, %cst {dimension_numbers = #tpu.dot_dimension_numbers<[1], [0], [0], [1], [0, 0, 1, 1], [], []>} : vector<256x32xbf16>, vector<32x256xbf16>, vector<256x256xf32> -> vector<256x256xf32>
    %c0_4 = arith.constant 0 : index
    %c0_5 = arith.constant 0 : index
    %5 = vector.load %arg4[%c0_4, %c0_5] : memref<256x1xf32, #tpu.memory_space<vmem>>, vector<256x1xf32>
    %6 = vector.broadcast %5 : vector<256x1xf32> to vector<256x256xf32>
    %7 = arith.addf %4, %6 : vector<256x256xf32>
    %cst_6 = arith.constant 5.000000e-01 : f32
    %8 = vector.broadcast %cst_6 : f32 to vector<256x256xf32>
    %9 = arith.mulf %8, %7 : vector<256x256xf32>
    %cst_7 = arith.constant 0.707106769 : f32
    %10 = vector.broadcast %cst_7 : f32 to vector<256x256xf32>
    %11 = arith.mulf %7, %10 : vector<256x256xf32>
    %12 = math.erf %11 : vector<256x256xf32>
    %cst_8 = arith.constant 1.000000e+00 : f32
    %13 = vector.broadcast %cst_8 : f32 to vector<256x256xf32>
    %14 = arith.addf %13, %12 : vector<256x256xf32>
    %15 = arith.mulf %9, %14 : vector<256x256xf32>
    %c0_9 = arith.constant 0 : index
    %c0_10 = arith.constant 0 : index
    %16 = vector.load %arg5[%c0_9, %c0_10] : memref<768x256xbf16, #tpu.memory_space<vmem>>, vector<768x256xbf16>
    %17 = arith.truncf %15 : vector<256x256xf32> to vector<256x256xbf16>
    %cst_11 = arith.constant dense<0.000000e+00> : vector<768x256xf32>
    %18 = tpu.matmul %16, %17, %cst_11 {dimension_numbers = #tpu.dot_dimension_numbers<[1], [0], [0], [1], [0, 0, 1, 1], [], []>} : vector<768x256xbf16>, vector<256x256xbf16>, vector<768x256xf32> -> vector<768x256xf32>
    %c0_12 = arith.constant 0 : index
    %c0_13 = arith.constant 0 : index
    %19 = vector.load %arg6[%c0_12, %c0_13] : memref<768x1xf32, #tpu.memory_space<vmem>>, vector<768x1xf32>
    %20 = vector.broadcast %19 : vector<768x1xf32> to vector<768x256xf32>
    %21 = arith.addf %18, %20 : vector<768x256xf32>
    %c0_14 = arith.constant 0 : index
    %c0_15 = arith.constant 0 : index
    %c0_16 = arith.constant 0 : index
    %22 = vector.load %arg7[%c0_14, %c0_15, %c0_16] : memref<1x768x256xf32, #tpu.memory_space<vmem>>, vector<1x768x256xf32>
    %23 = vector.shape_cast %22 : vector<1x768x256xf32> to vector<768x256xf32>
    %24 = vector.shape_cast %21 : vector<768x256xf32> to vector<1x768x256xf32>
    tpu.vector_store %arg7[%c0_14, %c0_15, %c0_16], %24 {strides = array<i32>} : memref<1x768x256xf32, #tpu.memory_space<vmem>>, vector<1x768x256xf32>,
    return
  }
  func.func @transform_0(%arg0: i32, %arg1: i32) -> (i32, i32, i32) {
    %c0_i32 = arith.constant 0 : i32
    %c0_i32_0 = arith.constant 0 : i32
    return %arg0, %c0_i32, %arg1 : i32, i32, i32
  }
  func.func @transform_1(%arg0: i32, %arg1: i32) -> (i32, i32) {
    %c0_i32 = arith.constant 0 : i32
    %c0_i32_0 = arith.constant 0 : i32
    %c0_i32_1 = arith.constant 0 : i32
    return %c0_i32, %c0_i32_0 : i32, i32
  }
  func.func @transform_2(%arg0: i32, %arg1: i32) -> (i32, i32) {
    %c0_i32 = arith.constant 0 : i32
    %c0_i32_0 = arith.constant 0 : i32
    %c0_i32_1 = arith.constant 0 : i32
    return %c0_i32, %c0_i32_0 : i32, i32
  }
  func.func @transform_3(%arg0: i32, %arg1: i32) -> (i32, i32) {
    %c0_i32 = arith.constant 0 : i32
    %c0_i32_0 = arith.constant 0 : i32
    %c0_i32_1 = arith.constant 0 : i32
    return %c0_i32, %c0_i32_0 : i32, i32
  }
  func.func @transform_4(%arg0: i32, %arg1: i32) -> (i32, i32) {
    %c0_i32 = arith.constant 0 : i32
    %c0_i32_0 = arith.constant 0 : i32
    %c0_i32_1 = arith.constant 0 : i32
    return %c0_i32, %c0_i32_0 : i32, i32
  }
  func.func @transform_5(%arg0: i32, %arg1: i32) -> (i32, i32, i32) {
    %c0_i32 = arith.constant 0 : i32
    %c0_i32_0 = arith.constant 0 : i32
    return %arg0, %c0_i32, %arg1 : i32, i32, i32
  }
}

</mosaic_0001>

<llo_original>
// kernel: tpu_custom_call.1
$region0: #{tpu_custom_call.1}
  #allocation0 [shape = 'u32[]', space=smem, size = 0x4, offset = 0x4, fixed_abs, tag = 'smem constant byte address 0x4 - core index']
  #allocation1 [shape = 'u32[144,128]{1,0:T(1,128)}', space=vmem, size = 0x12000, scoped, tag = 'internal scratch']
  %s0 = inlined_call_operand.hbm [shape: f32[2,32,256], index: 0, kind: input, shape index: {}]
  %s1 = inlined_call_operand.vmem [shape: bf16[256,32], index: 1, kind: input, shape index: {}]
  %s2 = inlined_call_operand.vmem [shape: f32[256,1], index: 2, kind: input, shape index: {}]
  %s3 = inlined_call_operand.hbm [shape: bf16[768,256], index: 3, kind: input, shape index: {}]
  %s4 = inlined_call_operand.vmem [shape: f32[768,1], index: 4, kind: input, shape index: {}]
  %s5 = inlined_call_operand.hbm [shape: f32[2,768,256], index: 5, kind: output, shape index: {}]
  %s6 = sld [smem:[#allocation0]]
  $region61: #{tpu_custom_call.1} parent=0
    _
  %s8 = ssub.s32 1, %s6
  %s9 = scalar_select 0, %s8, %s6
  $region1: #{tpu_custom_call.1} parent=0
    #allocation2 [shape = 'u8[65536]{0}', space=vmem, size = 0x10000, scoped, tag = 'input window, operand 0']
    #allocation3 [shape = 's32[2]{0}', space=sflag, size = 0x8, scoped, tag = 'scoped memory for tpu_custom_call.1']
    #allocation4 [shape = 's32[2]{0}', space=sflag, size = 0x8, scoped, tag = 'scoped memory for tpu_custom_call.1']
    #allocation5 [shape = 'u8[393216]{0}', space=vmem, size = 0x60000, scoped, tag = 'input window, operand 3, single buffered']
    #allocation6 [shape = 's32[1]{0}', space=sflag, size = 0x4, scoped, tag = 'scoped memory for tpu_custom_call.1']
    #allocation7 [shape = 'u8[1572864]{0}', space=vmem, size = 0x180000, scoped, tag = 'output window, operand 0']
    %10 = vsyncpa [#allocation3], 0
    %s11 = scalar_lea.sflag [#allocation3], 1
    %12 = vsyncpa %s11, 0
    %13 = vsyncpa [#allocation6], 0
    %14 = vsyncpa [#allocation4], 0
    %s15 = scalar_lea.sflag [#allocation4], 1
    %16 = vsyncpa %s15, 0
    loop: start=0, step=1, limit=4
    $region2: #{tpu_custom_call.1} parent=1 // loop_pre_header
      _
    $region3: #{tpu_custom_call.1} parent=1 // loop_header
      %s18 = sphi 0, %s22
      %p19 = scmp.ge.s32.totalorder %s18, 4
      %s25 = sphi 0, %s37
      %s26 = sphi 0, %s33
      %s27 = sphi 0, %s25
      %s28 = sphi 0, %s26
      %s29 = sphi 0, %s27
      %s30 = sphi 0, %s28
      %s42 = sphi 0, %s44
      %s45 = sphi 0, %s42
      %s46 = sphi 0, %s45
      %s62 = sphi 0, %s46
      %s66 = sphi 0, %s66
      %s68 = sphi 0, %s66
      %s69 = sphi 0, %s68
      %s83 = sphi 0, %s69
      %s87 = sphi 0, %s87
      %s89 = sphi 0, %s87
      %s90 = sphi 0, %s89
      %s104 = sphi 0, %s90
      %s108 = sphi 0, %s108
      %s110 = sphi 0, %s108
      %s111 = sphi 0, %s110
      %s125 = sphi 0, %s111
      %s129 = sphi 0, %s129
      %s131 = sphi 0, %s129
      %s132 = sphi 0, %s131
      %s146 = sphi 0, %s132
      %s154 = sphi 0, %s156
      %s157 = sphi 0, %s154
      %s158 = sphi 0, %s157
      %s174 = sphi 0, %s158
    $region4: #{tpu_custom_call.1} parent=1 // loop_header_branch
      %21 = sbr.rel (%p19) target = $region8
    $region5: #{tpu_custom_call.1} parent=1 // loop_body
      %s23 = ssub.s32 %s18, 1
      %s24 = ssub.s32 %s18, 2
      %s31 = sadd.s32 1, %s26
      %p32 = scmp.ge.s32.totalorder %s31, 1
      %s33 = scalar_select %p32, 0, %s31
      %s34 = sadd.s32 1, %s25
      %s35 = scalar_select %p32, %s34, %s25
      %p36 = scmp.ge.s32.totalorder %s35, 2
      %s37 = scalar_select %p36, 0, %s35
      %s38 = ssub.s32 %s25, %s37
      %s39 = ssub.s32 %s26, %s33
      %s40 = sor.u32 %s38, %s39
      %p41 = scmp.eq.s32.totalorder %s40, 0
      %s43 = sadd.s32 %s42, 1
      %s44 = scalar_select %p41, %s42, %s43
      %p47 = pneg %p41
      %p48 = scmp.eq.s32.totalorder %s18, 1
      %p49 = por %p47, %p48
      %p50 = scmp.ne.s32.totalorder %s42, %s45
      %p51 = scmp.eq.s32.totalorder %s18, 0
      %p52 = por %p50, %p51
      %p53 = scmp.ne.s32.totalorder %s42, %s45
      %p54 = scmp.eq.s32.totalorder %s23, 1
      %p55 = por %p53, %p54
      %p56 = scmp.ne.s32.totalorder %s45, %s46
      %p57 = scmp.eq.s32.totalorder %s23, 0
      %p58 = por %p56, %p57
      %p59 = scmp.ne.s32.totalorder %s45, %s46
      %p60 = scmp.eq.s32.totalorder %s24, 1
      %p61 = por %p59, %p60
      %p63 = scmp.ne.s32.totalorder %s46, %s62
      %p64 = scmp.eq.s32.totalorder %s24, 0
      %p65 = por %p63, %p64
      %s67 = sadd.s32 %s66, 1
      %p70 = scmp.eq.s32.totalorder %s18, 1
      %p71 = scmp.ne.s32.totalorder %s66, %s68
      %p72 = scmp.eq.s32.totalorder %s18, 0
      %p73 = por %p71, %p72
      %p74 = scmp.ne.s32.totalorder %s66, %s68
      %p75 = scmp.eq.s32.totalorder %s23, 1
      %p76 = por %p74, %p75
      %p77 = scmp.ne.s32.totalorder %s68, %s69
      %p78 = scmp.eq.s32.totalorder %s23, 0
      %p79 = por %p77, %p78
      %p80 = scmp.ne.s32.totalorder %s68, %s69
      %p81 = scmp.eq.s32.totalorder %s24, 1
      %p82 = por %p80, %p81
      %p84 = scmp.ne.s32.totalorder %s69, %s83
      %p85 = scmp.eq.s32.totalorder %s24, 0
      %p86 = por %p84, %p85
      %s88 = sadd.s32 %s87, 1
      %p91 = scmp.eq.s32.totalorder %s18, 1
      %p92 = scmp.ne.s32.totalorder %s87, %s89
      %p93 = scmp.eq.s32.totalorder %s18, 0
      %p94 = por %p92, %p93
      %p95 = scmp.ne.s32.totalorder %s87, %s89
      %p96 = scmp.eq.s32.totalorder %s23, 1
      %p97 = por %p95, %p96
      %p98 = scmp.ne.s32.totalorder %s89, %s90
      %p99 = scmp.eq.s32.totalorder %s23, 0
      %p100 = por %p98, %p99
      %p101 = scmp.ne.s32.totalorder %s89, %s90
      %p102 = scmp.eq.s32.totalorder %s24, 1
      %p103 = por %p101, %p102
      %p105 = scmp.ne.s32.totalorder %s90, %s104
      %p106 = scmp.eq.s32.totalorder %s24, 0
      %p107 = por %p105, %p106
      %s109 = sadd.s32 %s108, 1
      %p112 = scmp.eq.s32.totalorder %s18, 1
      %p113 = scmp.ne.s32.totalorder %s108, %s110
      %p114 = scmp.eq.s32.totalorder %s18, 0
      %p115 = por %p113, %p114
      %p116 = scmp.ne.s32.totalorder %s108, %s110
      %p117 = scmp.eq.s32.totalorder %s23, 1
      %p118 = por %p116, %p117
      %p119 = scmp.ne.s32.totalorder %s110, %s111
      %p120 = scmp.eq.s32.totalorder %s23, 0
      %p121 = por %p119, %p120
      %p122 = scmp.ne.s32.totalorder %s110, %s111
      %p123 = scmp.eq.s32.totalorder %s24, 1
      %p124 = por %p122, %p123
      %p126 = scmp.ne.s32.totalorder %s111, %s125
      %p127 = scmp.eq.s32.totalorder %s24, 0
      %p128 = por %p126, %p127
      %s130 = sadd.s32 %s129, 1
      %p133 = scmp.eq.s32.totalorder %s18, 1
      %p134 = scmp.ne.s32.totalorder %s129, %s131
      %p135 = scmp.eq.s32.totalorder %s18, 0
      %p136 = por %p134, %p135
      %p137 = scmp.ne.s32.totalorder %s129, %s131
      %p138 = scmp.eq.s32.totalorder %s23, 1
      %p139 = por %p137, %p138
      %p140 = scmp.ne.s32.totalorder %s131, %s132
      %p141 = scmp.eq.s32.totalorder %s23, 0
      %p142 = por %p140, %p141
      %p143 = scmp.ne.s32.totalorder %s131, %s132
      %p144 = scmp.eq.s32.totalorder %s24, 1
      %p145 = por %p143, %p144
      %p147 = scmp.ne.s32.totalorder %s132, %s146
      %p148 = scmp.eq.s32.totalorder %s24, 0
      %p149 = por %p147, %p148
      %s150 = ssub.s32 %s25, %s37
      %s151 = ssub.s32 %s26, %s33
      %s152 = sor.u32 %s150, %s151
      %p153 = scmp.eq.s32.totalorder %s152, 0
      %s155 = sadd.s32 %s154, 1
      %s156 = scalar_select %p153, %s154, %s155
      %p159 = pneg %p153
      %p160 = scmp.eq.s32.totalorder %s18, 1
      %p161 = por %p159, %p160
      %p162 = scmp.ne.s32.totalorder %s154, %s157
      %p163 = scmp.eq.s32.totalorder %s18, 0
      %p164 = por %p162, %p163
      %p165 = scmp.ne.s32.totalorder %s154, %s157
      %p166 = scmp.eq.s32.totalorder %s23, 1
      %p167 = por %p165, %p166
      %p168 = scmp.ne.s32.totalorder %s157, %s158
      %p169 = scmp.eq.s32.totalorder %s23, 0
      %p170 = por %p168, %p169
      %p171 = scmp.ne.s32.totalorder %s157, %s158
      %p172 = scmp.eq.s32.totalorder %s24, 1
      %p173 = por %p171, %p172
      %p175 = scmp.ne.s32.totalorder %s158, %s174
      %p176 = scmp.eq.s32.totalorder %s24, 0
      %p177 = por %p175, %p176
      %p178 = scmp.le.s32.totalorder 1, %s18
      %p179 = scmp.lt.s32.totalorder %s18, 3
      %p180 = pnand %p178, %p179
      %p181 = pneg %p180
      // Predicated region
      $region9: #{tpu_custom_call.1} parent=5 // pred_check
        _
      $region10: #{tpu_custom_call.1} parent=5 // pred_check_branch
        %183 = sbr.rel (%p180) target = $region12
      $region11: #{tpu_custom_call.1} parent=5 // pred_region
        %s184 = ssub.s32 %s18, 1
        // Predicated region
        $region13: #{tpu_custom_call.1} parent=11 // pred_check
          %p185 = pneg %p79
        $region14: #{tpu_custom_call.1} parent=11 // pred_check_branch
          %187 = sbr.rel (%p185) target = $region16
        $region15: #{tpu_custom_call.1} parent=11 // pred_region
          _
        $region16: #{tpu_custom_call.1} parent=11 // pred_fallthru
          _
        // Predicated region
        $region17: #{tpu_custom_call.1} parent=11 // pred_check
          %p188 = pneg %p100
        $region18: #{tpu_custom_call.1} parent=11 // pred_check_branch
          %190 = sbr.rel (%p188) target = $region20
        $region19: #{tpu_custom_call.1} parent=11 // pred_region
          _
        $region20: #{tpu_custom_call.1} parent=11 // pred_fallthru
          _
        // Predicated region
        $region21: #{tpu_custom_call.1} parent=11 // pred_check
          %p191 = pneg %p121
        $region22: #{tpu_custom_call.1} parent=11 // pred_check_branch
          %193 = sbr.rel (%p191) target = $region24
        $region23: #{tpu_custom_call.1} parent=11 // pred_region
          %s195 = ssub.s32 12288, 12288
          %196 = vsyncadd [#allocation6], %s195
          %s197 = sshll.u32 [#allocation5], 4
          %s198 = int_to_ptr.vmem [resolvable:$true] %s197
          %203 = dma.hbm_to_vmem [thread:$0]  %s3, 12288, %s198, [#allocation6], 128, 128, 8
        $region24: #{tpu_custom_call.1} parent=11 // pred_fallthru
          _
        // Predicated region
        $region25: #{tpu_custom_call.1} parent=11 // pred_check
          %p204 = pneg %p142
        $region26: #{tpu_custom_call.1} parent=11 // pred_check_branch
          %206 = sbr.rel (%p204) target = $region28
        $region27: #{tpu_custom_call.1} parent=11 // pred_region
          _
        $region28: #{tpu_custom_call.1} parent=11 // pred_fallthru
          _
      $region12: #{tpu_custom_call.1} parent=5 // pred_fallthru
        _
      %p207 = scmp.lt.s32.totalorder %s18, 2
      // Predicated region
      $region29: #{tpu_custom_call.1} parent=5 // pred_check
        %p208 = pneg %p207
      $region30: #{tpu_custom_call.1} parent=5 // pred_check_branch
        %210 = sbr.rel (%p208) target = $region32
      $region31: #{tpu_custom_call.1} parent=5 // pred_region
        // Predicated region
        $region33: #{tpu_custom_call.1} parent=31 // pred_check
          %p211 = pneg %p52
        $region34: #{tpu_custom_call.1} parent=31 // pred_check_branch
          %213 = sbr.rel (%p211) target = $region36
        $region35: #{tpu_custom_call.1} parent=31 // pred_region
          %s214 = sand.u32 %s42, 1
          %s215 = scalar_lea.sflag [#allocation3], %s214
          %s216 = sand.u32 %s42, 1
          %s217 = smul.addr %s216, 64
          %s218 = scalar_lea.vmem [#allocation2], %s217
          %s219 = smul.u32 2, %s26
          %s221 = ssub.s32 1024, 1024
          %222 = vsyncadd %s215, %s221
          %s223 = smul.addr %s25, 8
          %s224 = sadd.s32 %s219, %s223
          %s225 = smul.addr %s224, 128
          %s226 = scalar_lea.hbm %s0, %s225
          %s227 = sshll.u32 %s218, 4
          %s228 = int_to_ptr.vmem [resolvable:$true] %s227
          %233 = dma.hbm_to_vmem [thread:$0]  %s226, 1024, %s228, %s215, 256, 256, 16
        $region36: #{tpu_custom_call.1} parent=31 // pred_fallthru
          _
      $region32: #{tpu_custom_call.1} parent=5 // pred_fallthru
        _
      %p234 = scmp.le.s32.totalorder 1, %s18
      %p235 = scmp.lt.s32.totalorder %s18, 3
      %p236 = pnand %p234, %p235
      %p237 = pneg %p236
      // Predicated region
      $region37: #{tpu_custom_call.1} parent=5 // pred_check
        _
      $region38: #{tpu_custom_call.1} parent=5 // pred_check_branch
        %239 = sbr.rel (%p236) target = $region40
      $region39: #{tpu_custom_call.1} parent=5 // pred_region
        %s240 = ssub.s32 %s18, 1
        %s241 = sand.u32 %s45, 1
        %s242 = scalar_lea.sflag [#allocation3], %s241
        %s243 = sand.u32 %s45, 1
        %s244 = smul.addr %s243, 64
        %s245 = scalar_lea.vmem [#allocation2], %s244
        // Predicated region
        $region41: #{tpu_custom_call.1} parent=39 // pred_check
          %p246 = pneg %p58
        $region42: #{tpu_custom_call.1} parent=39 // pred_check_branch
          %248 = sbr.rel (%p246) target = $region44
        $region43: #{tpu_custom_call.1} parent=39 // pred_region
          %249 = dma.done %s242, 1024
        $region44: #{tpu_custom_call.1} parent=39 // pred_fallthru
          _
        // Predicated region
        $region45: #{tpu_custom_call.1} parent=39 // pred_check
          %p250 = pneg %p121
        $region46: #{tpu_custom_call.1} parent=39 // pred_check_branch
          %252 = sbr.rel (%p250) target = $region48
        $region47: #{tpu_custom_call.1} parent=39 // pred_region
          %253 = dma.done [#allocation6], 12288
        $region48: #{tpu_custom_call.1} parent=39 // pred_fallthru
          _
        %s254 = sand.u32 %s45, 1
        %s255 = scalar_lea.sflag [#allocation3], %s254
        %s256 = sand.u32 %s45, 1
        %s257 = smul.addr %s256, 64
        %s258 = scalar_lea.vmem [#allocation2], %s257
        %p259 = pneg %p58
        %p260 = pneg %p55
        %p261 = pneg %p79
        %p262 = pneg %p76
        %p263 = pneg %p100
        %p264 = pneg %p97
        %p265 = pneg %p121
        %p266 = pneg %p118
        %p267 = pneg %p142
        %p268 = pneg %p139
        %p269 = pneg %p170
        %p270 = pneg %p167
        %s271 = sand.u32 %s157, 1
        %s272 = scalar_lea.sflag [#allocation4], %s271
        %s273 = sand.u32 %s157, 1
        %s274 = smul.addr %s273, 1536
        %s275 = scalar_lea.vmem [#allocation7], %s274
        %s276 = smul.u32 2, %s28
        %s277 = smul.u32 2, %s28
        %v279 = vld [vmem:[%s245] sm:$0xff]
        %v280 = vld [vmem:[%s245 + $0x8] sm:$0xff]
        %v281 = vld [vmem:[%s245 + $0x10] sm:$0xff]
        %v282 = vld [vmem:[%s245 + $0x18] sm:$0xff]
        %v283 = vld [vmem:[%s245 + $0x20] sm:$0xff]
        %v284 = vld [vmem:[%s245 + $0x28] sm:$0xff]
        %v285 = vld [vmem:[%s245 + $0x30] sm:$0xff]
        %v286 = vld [vmem:[%s245 + $0x38] sm:$0xff]
        %v287 = vpack.c.bf16 %v281, %v279
        %v288 = vpack.c.bf16 %v282, %v280
        %v289 = vpack.c.bf16 %v285, %v283
        %v290 = vpack.c.bf16 %v286, %v284
        %v291 = vld [vmem:[%s1] sm:$0xf]
        %v292 = vld [vmem:[%s1 + $0x4] sm:$0xf]
        %v293 = vld [vmem:[%s1 + $0x8] sm:$0xf]
        %v294 = vld [vmem:[%s1 + $0xc] sm:$0xf]
        %v295 = vld [vmem:[%s1 + $0x10] sm:$0xf]
        %v296 = vld [vmem:[%s1 + $0x14] sm:$0xf]
        %v297 = vld [vmem:[%s1 + $0x18] sm:$0xf]
        %v298 = vld [vmem:[%s1 + $0x1c] sm:$0xf]
        %v299 = vld [vmem:[%s1 + $0x20] sm:$0xf]
        %v300 = vld [vmem:[%s1 + $0x24] sm:$0xf]
        %v301 = vld [vmem:[%s1 + $0x28] sm:$0xf]
        %v302 = vld [vmem:[%s1 + $0x2c] sm:$0xf]
        %v303 = vld [vmem:[%s1 + $0x30] sm:$0xf]
        %v304 = vld [vmem:[%s1 + $0x34] sm:$0xf]
        %v305 = vld [vmem:[%s1 + $0x38] sm:$0xf]
        %v306 = vld [vmem:[%s1 + $0x3c] sm:$0xf]
        %v307 = vld [vmem:[%s1 + $0x40] sm:$0xf]
        %v308 = vld [vmem:[%s1 + $0x44] sm:$0xf]
        %v309 = vld [vmem:[%s1 + $0x48] sm:$0xf]
        %v310 = vld [vmem:[%s1 + $0x4c] sm:$0xf]
        %v311 = vld [vmem:[%s1 + $0x50] sm:$0xf]
        %v312 = vld [vmem:[%s1 + $0x54] sm:$0xf]
        %v313 = vld [vmem:[%s1 + $0x58] sm:$0xf]
        %v314 = vld [vmem:[%s1 + $0x5c] sm:$0xf]
        %v315 = vld [vmem:[%s1 + $0x60] sm:$0xf]
        %v316 = vld [vmem:[%s1 + $0x64] sm:$0xf]
        %v317 = vld [vmem:[%s1 + $0x68] sm:$0xf]
        %v318 = vld [vmem:[%s1 + $0x6c] sm:$0xf]
        %v319 = vld [vmem:[%s1 + $0x70] sm:$0xf]
        %v320 = vld [vmem:[%s1 + $0x74] sm:$0xf]
        %v321 = vld [vmem:[%s1 + $0x78] sm:$0xf]
        %v322 = vld [vmem:[%s1 + $0x7c] sm:$0xf]
        %v323 = vld [vmem:[%s2] sm:$0xff]
        %v324 = vld [vmem:[%s2 + $0x8] sm:$0xff]
        %v325 = vld [vmem:[%s2 + $0x10] sm:$0xff]
        %v326 = vld [vmem:[%s2 + $0x18] sm:$0xff]
        %v327 = vld [vmem:[%s2 + $0x20] sm:$0xff]
        %v328 = vld [vmem:[%s2 + $0x28] sm:$0xff]
        %v329 = vld [vmem:[%s2 + $0x30] sm:$0xff]
        %v330 = vld [vmem:[%s2 + $0x38] sm:$0xff]
        %v331 = vld [vmem:[%s2 + $0x40] sm:$0xff]
        %v332 = vld [vmem:[%s2 + $0x48] sm:$0xff]
        %v333 = vld [vmem:[%s2 + $0x50] sm:$0xff]
        %v334 = vld [vmem:[%s2 + $0x58] sm:$0xff]
        %v335 = vld [vmem:[%s2 + $0x60] sm:$0xff]
        %v336 = vld [vmem:[%s2 + $0x68] sm:$0xff]
        %v337 = vld [vmem:[%s2 + $0x70] sm:$0xff]
        %v338 = vld [vmem:[%s2 + $0x78] sm:$0xff]
        %v339 = vld [vmem:[%s2 + $0x80] sm:$0xff]
        %v340 = vld [vmem:[%s2 + $0x88] sm:$0xff]
        %v341 = vld [vmem:[%s2 + $0x90] sm:$0xff]
        %v342 = vld [vmem:[%s2 + $0x98] sm:$0xff]
        %v343 = vld [vmem:[%s2 + $0xa0] sm:$0xff]
        %v344 = vld [vmem:[%s2 + $0xa8] sm:$0xff]
        %v345 = vld [vmem:[%s2 + $0xb0] sm:$0xff]
        %v346 = vld [vmem:[%s2 + $0xb8] sm:$0xff]
        %v347 = vld [vmem:[%s2 + $0xc0] sm:$0xff]
        %v348 = vld [vmem:[%s2 + $0xc8] sm:$0xff]
        %v349 = vld [vmem:[%s2 + $0xd0] sm:$0xff]
        %v350 = vld [vmem:[%s2 + $0xd8] sm:$0xff]
        %v351 = vld [vmem:[%s2 + $0xe0] sm:$0xff]
        %v352 = vld [vmem:[%s2 + $0xe8] sm:$0xff]
        %v353 = vld [vmem:[%s2 + $0xf0] sm:$0xff]
        %v354 = vld [vmem:[%s2 + $0xf8] sm:$0xff]
        %356 = vset.pattern.permute.xlu0 0
        %357 = vperm.xlu0 %356, %v323
        %v358 = vpop.permute.xlu0 %357
        %361 = vset.pattern.permute.xlu0 0
        %362 = vperm.xlu0 %361, %v324
        %v363 = vpop.permute.xlu0 %362
        %366 = vset.pattern.permute.xlu0 0
        %367 = vperm.xlu0 %366, %v325
        %v368 = vpop.permute.xlu0 %367
        %371 = vset.pattern.permute.xlu0 0
        %372 = vperm.xlu0 %371, %v326
        %v373 = vpop.permute.xlu0 %372
        %376 = vset.pattern.permute.xlu0 0
        %377 = vperm.xlu0 %376, %v327
        %v378 = vpop.permute.xlu0 %377
        %381 = vset.pattern.permute.xlu0 0
        %382 = vperm.xlu0 %381, %v328
        %v383 = vpop.permute.xlu0 %382
        %386 = vset.pattern.permute.xlu0 0
        %387 = vperm.xlu0 %386, %v329
        %v388 = vpop.permute.xlu0 %387
        %391 = vset.pattern.permute.xlu0 0
        %392 = vperm.xlu0 %391, %v330
        %v393 = vpop.permute.xlu0 %392
        %396 = vset.pattern.permute.xlu0 0
        %397 = vperm.xlu0 %396, %v331
        %v398 = vpop.permute.xlu0 %397
        %401 = vset.pattern.permute.xlu0 0
        %402 = vperm.xlu0 %401, %v332
        %v403 = vpop.permute.xlu0 %402
        %406 = vset.pattern.permute.xlu0 0
        %407 = vperm.xlu0 %406, %v333
        %v408 = vpop.permute.xlu0 %407
        %411 = vset.pattern.permute.xlu0 0
        %412 = vperm.xlu0 %411, %v334
        %v413 = vpop.permute.xlu0 %412
        %416 = vset.pattern.permute.xlu0 0
        %417 = vperm.xlu0 %416, %v335
        %v418 = vpop.permute.xlu0 %417
        %421 = vset.pattern.permute.xlu0 0
        %422 = vperm.xlu0 %421, %v336
        %v423 = vpop.permute.xlu0 %422
        %426 = vset.pattern.permute.xlu0 0
        %427 = vperm.xlu0 %426, %v337
        %v428 = vpop.permute.xlu0 %427
        %431 = vset.pattern.permute.xlu0 0
        %432 = vperm.xlu0 %431, %v338
        %v433 = vpop.permute.xlu0 %432
        %436 = vset.pattern.permute.xlu0 0
        %437 = vperm.xlu0 %436, %v339
        %v438 = vpop.permute.xlu0 %437
        %441 = vset.pattern.permute.xlu0 0
        %442 = vperm.xlu0 %441, %v340
        %v443 = vpop.permute.xlu0 %442
        %446 = vset.pattern.permute.xlu0 0
        %447 = vperm.xlu0 %446, %v341
        %v448 = vpop.permute.xlu0 %447
        %451 = vset.pattern.permute.xlu0 0
        %452 = vperm.xlu0 %451, %v342
        %v453 = vpop.permute.xlu0 %452
        %456 = vset.pattern.permute.xlu0 0
        %457 = vperm.xlu0 %456, %v343
        %v458 = vpop.permute.xlu0 %457
        %461 = vset.pattern.permute.xlu0 0
        %462 = vperm.xlu0 %461, %v344
        %v463 = vpop.permute.xlu0 %462
        %466 = vset.pattern.permute.xlu0 0
        %467 = vperm.xlu0 %466, %v345
        %v468 = vpop.permute.xlu0 %467
        %471 = vset.pattern.permute.xlu0 0
        %472 = vperm.xlu0 %471, %v346
        %v473 = vpop.permute.xlu0 %472
        %476 = vset.pattern.permute.xlu0 0
        %477 = vperm.xlu0 %476, %v347
        %v478 = vpop.permute.xlu0 %477
        %481 = vset.pattern.permute.xlu0 0
        %482 = vperm.xlu0 %481, %v348
        %v483 = vpop.permute.xlu0 %482
        %486 = vset.pattern.permute.xlu0 0
        %487 = vperm.xlu0 %486, %v349
        %v488 = vpop.permute.xlu0 %487
        %491 = vset.pattern.permute.xlu0 0
        %492 = vperm.xlu0 %491, %v350
        %v493 = vpop.permute.xlu0 %492
        %496 = vset.pattern.permute.xlu0 0
        %497 = vperm.xlu0 %496, %v351
        %v498 = vpop.permute.xlu0 %497
        %501 = vset.pattern.permute.xlu0 0
        %502 = vperm.xlu0 %501, %v352
        %v503 = vpop.permute.xlu0 %502
        %506 = vset.pattern.permute.xlu0 0
        %507 = vperm.xlu0 %506, %v353
        %v508 = vpop.permute.xlu0 %507
        %511 = vset.pattern.permute.xlu0 0
        %512 = vperm.xlu0 %511, %v354
        %v513 = vpop.permute.xlu0 %512
        %v547 = vunpack.c.l.b16 %v291
        %v548 = vunpack.c.l.b16 %v292
        %v549 = vunpack.c.l.b16 %v293
        %v550 = vunpack.c.l.b16 %v294
        %v551 = vunpack.c.l.b16 %v295
        %v552 = vunpack.c.l.b16 %v296
        %v553 = vunpack.c.l.b16 %v297
        %v554 = vunpack.c.l.b16 %v298
        %v555 = vunpack.c.l.b16 %v299
        %v556 = vunpack.c.l.b16 %v300
        %v557 = vunpack.c.l.b16 %v301
        %v558 = vunpack.c.l.b16 %v302
        %v559 = vunpack.c.l.b16 %v303
        %v560 = vunpack.c.l.b16 %v304
        %v561 = vunpack.c.l.b16 %v305
        %v562 = vunpack.c.l.b16 %v306
        %v563 = vunpack.c.l.b16 %v307
        %v564 = vunpack.c.l.b16 %v308
        %v565 = vunpack.c.l.b16 %v309
        %v566 = vunpack.c.l.b16 %v310
        %v567 = vunpack.c.l.b16 %v311
        %v568 = vunpack.c.l.b16 %v312
        %v569 = vunpack.c.l.b16 %v313
        %v570 = vunpack.c.l.b16 %v314
        %v571 = vunpack.c.l.b16 %v315
        %v572 = vunpack.c.l.b16 %v316
        %v573 = vunpack.c.l.b16 %v317
        %v574 = vunpack.c.l.b16 %v318
        %v575 = vunpack.c.l.b16 %v319
        %v576 = vunpack.c.l.b16 %v320
        %v577 = vunpack.c.l.b16 %v321
        %v578 = vunpack.c.l.b16 %v322
        %v579 = vpack.c.b16 %v548, %v547
        %v580 = vpack.c.b16 %v550, %v549
        %v581 = vpack.c.b16 %v552, %v551
        %v582 = vpack.c.b16 %v554, %v553
        %v583 = vpack.c.b16 %v556, %v555
        %v584 = vpack.c.b16 %v558, %v557
        %v585 = vpack.c.b16 %v560, %v559
        %v586 = vpack.c.b16 %v562, %v561
        %v587 = vpack.c.b16 %v564, %v563
        %v588 = vpack.c.b16 %v566, %v565
        %v589 = vpack.c.b16 %v568, %v567
        %v590 = vpack.c.b16 %v570, %v569
        %v591 = vpack.c.b16 %v572, %v571
        %v592 = vpack.c.b16 %v574, %v573
        %v593 = vpack.c.b16 %v576, %v575
        %v594 = vpack.c.b16 %v578, %v577
        %vm595 = vcmask 261120
        %v597 = vsel %vm595, %v579, 0
        %v600 = vsel %vm595, %v580, 0
        %v603 = vsel %vm595, %v581, 0
        %v606 = vsel %vm595, %v582, 0
        %v609 = vsel %vm595, %v583, 0
        %v612 = vsel %vm595, %v584, 0
        %v615 = vsel %vm595, %v585, 0
        %v618 = vsel %vm595, %v586, 0
        %v621 = vsel %vm595, %v587, 0
        %v624 = vsel %vm595, %v588, 0
        %v627 = vsel %vm595, %v589, 0
        %v630 = vsel %vm595, %v590, 0
        %v633 = vsel %vm595, %v591, 0
        %v636 = vsel %vm595, %v592, 0
        %v639 = vsel %vm595, %v593, 0
        %v642 = vsel %vm595, %v594, 0
        %644 = vmatprep.subr.bf16.mxu0 %v288
        %645 = vmatpush1.bf16.msra.mxu0 %v287
        %646 = vmatprep.subr.bf16.mxu0 %v290
        %647 = vmatpush1.bf16.msra.mxu0 %v289
        %648 = vmatprep.subr.bf16.mxu0 0
        %649 = vmatpush1.bf16.msra.mxu0 0
        %650 = vmatprep.subr.bf16.mxu0 0
        %651 = vmatpush1.bf16.msra.mxu0 0
        %652 = vmatprep.subr.bf16.mxu0 0
        %653 = vmatpush1.bf16.msra.mxu0 0
        %654 = vmatprep.subr.bf16.mxu0 0
        %655 = vmatpush1.bf16.msra.mxu0 0
        %656 = vmatprep.subr.bf16.mxu0 0
        %657 = vmatpush1.bf16.msra.mxu0 0
        %658 = vmatprep.subr.bf16.mxu0 0
        %659 = vmatpush1.bf16.msra.mxu0 0
        %660 = vmatprep.subr.bf16.mxu0 0
        %661 = vmatpush1.bf16.msra.mxu0 0
        %662 = vmatprep.subr.bf16.mxu0 0
        %663 = vmatpush1.bf16.msra.mxu0 0
        %664 = vmatprep.subr.bf16.mxu0 0
        %665 = vmatpush1.bf16.msra.mxu0 0
        %666 = vmatprep.subr.bf16.mxu0 0
        %667 = vmatpush1.bf16.msra.mxu0 0
        %668 = vmatprep.subr.bf16.mxu0 0
        %669 = vmatpush1.bf16.msra.mxu0 0
        %670 = vmatprep.subr.bf16.mxu0 0
        %671 = vmatpush1.bf16.msra.mxu0 0
        %672 = vmatprep.subr.bf16.mxu0 0
        %673 = vmatpush1.bf16.msra.mxu0 0
        %674 = vmatprep.subr.bf16.mxu0 0
        %675 = vmatpush1.bf16.msra.mxu0 0
        %676 = vmatprep.mubr.bf16.mxu0 0
        %677 = vmatmul.mubr.bf16.gmra.mrb[0].mxu0 %v597
        %v678 = vpop.f32.mrb[0].mxu0
        %v679 = vadd.f32 %v358, %v678
        %v680 = vpop.f32.mrb[0].mxu0
        %v681 = vadd.f32 %v358, %v680
        %v682 = vpop.f32.mrb[0].mxu0
        %v683 = vadd.f32 %v363, %v682
        %v684 = vpop.f32.mrb[0].mxu0
        %v685 = vadd.f32 %v363, %v684
        %686 = vmatprep.mubr.bf16.mxu0 0
        %687 = vmatmul.mubr.bf16.gmra.mrb[0].mxu0 %v600
        %v688 = vpop.f32.mrb[0].mxu0
        %v689 = vadd.f32 %v368, %v688
        %v690 = vpop.f32.mrb[0].mxu0
        %v691 = vadd.f32 %v368, %v690
        %v692 = vpop.f32.mrb[0].mxu0
        %v693 = vadd.f32 %v373, %v692
        %v694 = vpop.f32.mrb[0].mxu0
        %v695 = vadd.f32 %v373, %v694
        %696 = vmatprep.mubr.bf16.mxu0 0
        %697 = vmatmul.mubr.bf16.gmra.mrb[0].mxu0 %v603
        %v698 = vpop.f32.mrb[0].mxu0
        %v699 = vadd.f32 %v378, %v698
        %v700 = vpop.f32.mrb[0].mxu0
        %v701 = vadd.f32 %v378, %v700
        %v702 = vpop.f32.mrb[0].mxu0
        %v703 = vadd.f32 %v383, %v702
        %v704 = vpop.f32.mrb[0].mxu0
        %v705 = vadd.f32 %v383, %v704
        %706 = vmatprep.mubr.bf16.mxu0 0
        %707 = vmatmul.mubr.bf16.gmra.mrb[0].mxu0 %v606
        %v708 = vpop.f32.mrb[0].mxu0
        %v709 = vadd.f32 %v388, %v708
        %v710 = vpop.f32.mrb[0].mxu0
        %v711 = vadd.f32 %v388, %v710
        %v712 = vpop.f32.mrb[0].mxu0
        %v713 = vadd.f32 %v393, %v712
        %v714 = vpop.f32.mrb[0].mxu0
        %v715 = vadd.f32 %v393, %v714
        %716 = vmatprep.mubr.bf16.mxu0 0
        %717 = vmatmul.mubr.bf16.gmra.mrb[0].mxu0 %v609
        %v718 = vpop.f32.mrb[0].mxu0
        %v719 = vadd.f32 %v398, %v718
        %v720 = vpop.f32.mrb[0].mxu0
        %v721 = vadd.f32 %v398, %v720
        %v722 = vpop.f32.mrb[0].mxu0
        %v723 = vadd.f32 %v403, %v722
        %v724 = vpop.f32.mrb[0].mxu0
        %v725 = vadd.f32 %v403, %v724
        %726 = vmatprep.mubr.bf16.mxu0 0
        %727 = vmatmul.mubr.bf16.gmra.mrb[0].mxu0 %v612
        %v728 = vpop.f32.mrb[0].mxu0
        %v729 = vadd.f32 %v408, %v728
        %v730 = vpop.f32.mrb[0].mxu0
        %v731 = vadd.f32 %v408, %v730
        %v732 = vpop.f32.mrb[0].mxu0
        %v733 = vadd.f32 %v413, %v732
        %v734 = vpop.f32.mrb[0].mxu0
        %v735 = vadd.f32 %v413, %v734
        %736 = vmatprep.mubr.bf16.mxu0 0
        %737 = vmatmul.mubr.bf16.gmra.mrb[0].mxu0 %v615
        %v738 = vpop.f32.mrb[0].mxu0
        %v739 = vadd.f32 %v418, %v738
        %v740 = vpop.f32.mrb[0].mxu0
        %v741 = vadd.f32 %v418, %v740
        %v742 = vpop.f32.mrb[0].mxu0
        %v743 = vadd.f32 %v423, %v742
        %v744 = vpop.f32.mrb[0].mxu0
        %v745 = vadd.f32 %v423, %v744
        %746 = vmatprep.mubr.bf16.mxu0 0
        %747 = vmatmul.mubr.bf16.gmra.mrb[0].mxu0 %v618
        %v748 = vpop.f32.mrb[0].mxu0
        %v749 = vadd.f32 %v428, %v748
        %v750 = vpop.f32.mrb[0].mxu0
        %v751 = vadd.f32 %v428, %v750
        %v752 = vpop.f32.mrb[0].mxu0
        %v753 = vadd.f32 %v433, %v752
        %v754 = vpop.f32.mrb[0].mxu0
        %v755 = vadd.f32 %v433, %v754
        %756 = vmatprep.mubr.bf16.mxu0 0
        %757 = vmatmul.mubr.bf16.gmra.mrb[0].mxu0 %v621
        %v758 = vpop.f32.mrb[0].mxu0
        %v759 = vadd.f32 %v438, %v758
        %v760 = vpop.f32.mrb[0].mxu0
        %v761 = vadd.f32 %v438, %v760
        %v762 = vpop.f32.mrb[0].mxu0
        %v763 = vadd.f32 %v443, %v762
        %v764 = vpop.f32.mrb[0].mxu0
        %v765 = vadd.f32 %v443, %v764
        %766 = vmatprep.mubr.bf16.mxu0 0
        %767 = vmatmul.mubr.bf16.gmra.mrb[0].mxu0 %v624
        %v768 = vpop.f32.mrb[0].mxu0
        %v769 = vadd.f32 %v448, %v768
        %v770 = vpop.f32.mrb[0].mxu0
        %v771 = vadd.f32 %v448, %v770
        %v772 = vpop.f32.mrb[0].mxu0
        %v773 = vadd.f32 %v453, %v772
        %v774 = vpop.f32.mrb[0].mxu0
        %v775 = vadd.f32 %v453, %v774
        %776 = vmatprep.mubr.bf16.mxu0 0
        %777 = vmatmul.mubr.bf16.gmra.mrb[0].mxu0 %v627
        %v778 = vpop.f32.mrb[0].mxu0
        %v779 = vadd.f32 %v458, %v778
        %v780 = vpop.f32.mrb[0].mxu0
        %v781 = vadd.f32 %v458, %v780
        %v782 = vpop.f32.mrb[0].mxu0
        %v783 = vadd.f32 %v463, %v782
        %v784 = vpop.f32.mrb[0].mxu0
        %v785 = vadd.f32 %v463, %v784
        %786 = vmatprep.mubr.bf16.mxu0 0
        %787 = vmatmul.mubr.bf16.gmra.mrb[0].mxu0 %v630
        %v788 = vpop.f32.mrb[0].mxu0
        %v789 = vadd.f32 %v468, %v788
        %v790 = vpop.f32.mrb[0].mxu0
        %v791 = vadd.f32 %v468, %v790
        %v792 = vpop.f32.mrb[0].mxu0
        %v793 = vadd.f32 %v473, %v792
        %v794 = vpop.f32.mrb[0].mxu0
        %v795 = vadd.f32 %v473, %v794
        %796 = vmatprep.mubr.bf16.mxu0 0
        %797 = vmatmul.mubr.bf16.gmra.mrb[0].mxu0 %v633
        %v798 = vpop.f32.mrb[0].mxu0
        %v799 = vadd.f32 %v478, %v798
        %v800 = vpop.f32.mrb[0].mxu0
        %v801 = vadd.f32 %v478, %v800
        %v802 = vpop.f32.mrb[0].mxu0
        %v803 = vadd.f32 %v483, %v802
        %v804 = vpop.f32.mrb[0].mxu0
        %v805 = vadd.f32 %v483, %v804
        %806 = vmatprep.mubr.bf16.mxu0 0
        %807 = vmatmul.mubr.bf16.gmra.mrb[0].mxu0 %v636
        %v808 = vpop.f32.mrb[0].mxu0
        %v809 = vadd.f32 %v488, %v808
        %v810 = vpop.f32.mrb[0].mxu0
        %v811 = vadd.f32 %v488, %v810
        %v812 = vpop.f32.mrb[0].mxu0
        %v813 = vadd.f32 %v493, %v812
        %v814 = vpop.f32.mrb[0].mxu0
        %v815 = vadd.f32 %v493, %v814
        %816 = vmatprep.mubr.bf16.mxu0 0
        %817 = vmatmul.mubr.bf16.gmra.mrb[0].mxu0 %v639
        %v818 = vpop.f32.mrb[0].mxu0
        %v819 = vadd.f32 %v498, %v818
        %v820 = vpop.f32.mrb[0].mxu0
        %v821 = vadd.f32 %v498, %v820
        %v822 = vpop.f32.mrb[0].mxu0
        %v823 = vadd.f32 %v503, %v822
        %v824 = vpop.f32.mrb[0].mxu0
        %v825 = vadd.f32 %v503, %v824
        %826 = vmatprep.mubr.bf16.mxu0 0
        %827 = vmatmul.mubr.bf16.gmra.mrb[0].mxu0 %v642
        %v828 = vpop.f32.mrb[0].mxu0
        %v829 = vadd.f32 %v508, %v828
        %v830 = vpop.f32.mrb[0].mxu0
        %v831 = vadd.f32 %v508, %v830
        %v832 = vpop.f32.mrb[0].mxu0
        %v833 = vadd.f32 %v513, %v832
        %v834 = vpop.f32.mrb[0].mxu0
        %v835 = vadd.f32 %v513, %v834
        %836 = vdwg.mxu0
        %v837 = vmul.f32 %v679, 0.5
        %v838 = vmul.f32 %v681, 0.5
        %v839 = vmul.f32 %v683, 0.5
        %v840 = vmul.f32 %v685, 0.5
        %v841 = vmul.f32 %v689, 0.5
        %v842 = vmul.f32 %v691, 0.5
        %v843 = vmul.f32 %v693, 0.5
        %v844 = vmul.f32 %v695, 0.5
        %v845 = vmul.f32 %v699, 0.5
        %v846 = vmul.f32 %v701, 0.5
        %v847 = vmul.f32 %v703, 0.5
        %v848 = vmul.f32 %v705, 0.5
        %v849 = vmul.f32 %v709, 0.5
        %v850 = vmul.f32 %v711, 0.5
        %v851 = vmul.f32 %v713, 0.5
        %v852 = vmul.f32 %v715, 0.5
        %v853 = vmul.f32 %v719, 0.5
        %v854 = vmul.f32 %v721, 0.5
        %v855 = vmul.f32 %v723, 0.5
        %v856 = vmul.f32 %v725, 0.5
        %v857 = vmul.f32 %v729, 0.5
        %v858 = vmul.f32 %v731, 0.5
        %v859 = vmul.f32 %v733, 0.5
        %v860 = vmul.f32 %v735, 0.5
        %v861 = vmul.f32 %v739, 0.5
        %v862 = vmul.f32 %v741, 0.5
        %v863 = vmul.f32 %v743, 0.5
        %v864 = vmul.f32 %v745, 0.5
        %v865 = vmul.f32 %v749, 0.5
        %v866 = vmul.f32 %v751, 0.5
        %v867 = vmul.f32 %v753, 0.5
        %v868 = vmul.f32 %v755, 0.5
        %v869 = vmul.f32 %v759, 0.5
        %v870 = vmul.f32 %v761, 0.5
        %v871 = vmul.f32 %v763, 0.5
        %v872 = vmul.f32 %v765, 0.5
        %v873 = vmul.f32 %v769, 0.5
        %v874 = vmul.f32 %v771, 0.5
        %v875 = vmul.f32 %v773, 0.5
        %v876 = vmul.f32 %v775, 0.5
        %v877 = vmul.f32 %v779, 0.5
        %v878 = vmul.f32 %v781, 0.5
        %v879 = vmul.f32 %v783, 0.5
        %v880 = vmul.f32 %v785, 0.5
        %v881 = vmul.f32 %v789, 0.5
        %v882 = vmul.f32 %v791, 0.5
        %v883 = vmul.f32 %v793, 0.5
        %v884 = vmul.f32 %v795, 0.5
        %v885 = vmul.f32 %v799, 0.5
        %v886 = vmul.f32 %v801, 0.5
        %v887 = vmul.f32 %v803, 0.5
        %v888 = vmul.f32 %v805, 0.5
        %v889 = vmul.f32 %v809, 0.5
        %v890 = vmul.f32 %v811, 0.5
        %v891 = vmul.f32 %v813, 0.5
        %v892 = vmul.f32 %v815, 0.5
        %v893 = vmul.f32 %v819, 0.5
        %v894 = vmul.f32 %v821, 0.5
        %v895 = vmul.f32 %v823, 0.5
        %v896 = vmul.f32 %v825, 0.5
        %v897 = vmul.f32 %v829, 0.5
        %v898 = vmul.f32 %v831, 0.5
        %v899 = vmul.f32 %v833, 0.5
        %v900 = vmul.f32 %v835, 0.5
        %v901 = vmul.f32 %v679, 0.70710677
        %v902 = vmul.f32 %v681, 0.70710677
        %v903 = vmul.f32 %v683, 0.70710677
        %v904 = vmul.f32 %v685, 0.70710677
        %v905 = vmul.f32 %v689, 0.70710677
        %v906 = vmul.f32 %v691, 0.70710677
        %v907 = vmul.f32 %v693, 0.70710677
        %v908 = vmul.f32 %v695, 0.70710677
        %v909 = vmul.f32 %v699, 0.70710677
        %v910 = vmul.f32 %v701, 0.70710677
        %v911 = vmul.f32 %v703, 0.70710677
        %v912 = vmul.f32 %v705, 0.70710677
        %v913 = vmul.f32 %v709, 0.70710677
        %v914 = vmul.f32 %v711, 0.70710677
        %v915 = vmul.f32 %v713, 0.70710677
        %v916 = vmul.f32 %v715, 0.70710677
        %v917 = vmul.f32 %v719, 0.70710677
        %v918 = vmul.f32 %v721, 0.70710677
        %v919 = vmul.f32 %v723, 0.70710677
        %v920 = vmul.f32 %v725, 0.70710677
        %v921 = vmul.f32 %v729, 0.70710677
        %v922 = vmul.f32 %v731, 0.70710677
        %v923 = vmul.f32 %v733, 0.70710677
        %v924 = vmul.f32 %v735, 0.70710677
        %v925 = vmul.f32 %v739, 0.70710677
        %v926 = vmul.f32 %v741, 0.70710677
        %v927 = vmul.f32 %v743, 0.70710677
        %v928 = vmul.f32 %v745, 0.70710677
        %v929 = vmul.f32 %v749, 0.70710677
        %v930 = vmul.f32 %v751, 0.70710677
        %v931 = vmul.f32 %v753, 0.70710677
        %v932 = vmul.f32 %v755, 0.70710677
        %v933 = vmul.f32 %v759, 0.70710677
        %v934 = vmul.f32 %v761, 0.70710677
        %v935 = vmul.f32 %v763, 0.70710677
        %v936 = vmul.f32 %v765, 0.70710677
        %v937 = vmul.f32 %v769, 0.70710677
        %v938 = vmul.f32 %v771, 0.70710677
        %v939 = vmul.f32 %v773, 0.70710677
        %v940 = vmul.f32 %v775, 0.70710677
        %v941 = vmul.f32 %v779, 0.70710677
        %v942 = vmul.f32 %v781, 0.70710677
        %v943 = vmul.f32 %v783, 0.70710677
        %v944 = vmul.f32 %v785, 0.70710677
        %v945 = vmul.f32 %v789, 0.70710677
        %v946 = vmul.f32 %v791, 0.70710677
        %v947 = vmul.f32 %v793, 0.70710677
        %v948 = vmul.f32 %v795, 0.70710677
        %v949 = vmul.f32 %v799, 0.70710677
        %v950 = vmul.f32 %v801, 0.70710677
        %v951 = vmul.f32 %v803, 0.70710677
        %v952 = vmul.f32 %v805, 0.70710677
        %v953 = vmul.f32 %v809, 0.70710677
        %v954 = vmul.f32 %v811, 0.70710677
        %v955 = vmul.f32 %v813, 0.70710677
        %v956 = vmul.f32 %v815, 0.70710677
        %v957 = vmul.f32 %v819, 0.70710677
        %v958 = vmul.f32 %v821, 0.70710677
        %v959 = vmul.f32 %v823, 0.70710677
        %v960 = vmul.f32 %v825, 0.70710677
        %v961 = vmul.f32 %v829, 0.70710677
        %v962 = vmul.f32 %v831, 0.70710677
        %v963 = vmul.f32 %v833, 0.70710677
        %v964 = vmul.f32 %v835, 0.70710677
        %v965 = verf.f32.pop %v901
        %v966 = verf.f32.pop %v902
        %v967 = verf.f32.pop %v903
        %v968 = verf.f32.pop %v904
        %v969 = verf.f32.pop %v905
        %v970 = verf.f32.pop %v906
        %v971 = verf.f32.pop %v907
        %v972 = verf.f32.pop %v908
        %v973 = verf.f32.pop %v909
        %v974 = verf.f32.pop %v910
        %v975 = verf.f32.pop %v911
        %v976 = verf.f32.pop %v912
        %v977 = verf.f32.pop %v913
        %v978 = verf.f32.pop %v914
        %v979 = verf.f32.pop %v915
        %v980 = verf.f32.pop %v916
        %v981 = verf.f32.pop %v917
        %v982 = verf.f32.pop %v918
        %v983 = verf.f32.pop %v919
        %v984 = verf.f32.pop %v920
        %v985 = verf.f32.pop %v921
        %v986 = verf.f32.pop %v922
        %v987 = verf.f32.pop %v923
        %v988 = verf.f32.pop %v924
        %v989 = verf.f32.pop %v925
        %v990 = verf.f32.pop %v926
        %v991 = verf.f32.pop %v927
        %v992 = verf.f32.pop %v928
        %v993 = verf.f32.pop %v929
        %v994 = verf.f32.pop %v930
        %v995 = verf.f32.pop %v931
        %v996 = verf.f32.pop %v932
        %v997 = verf.f32.pop %v933
        %v998 = verf.f32.pop %v934
        %v999 = verf.f32.pop %v935
        %v1000 = verf.f32.pop %v936
        %v1001 = verf.f32.pop %v937
        %v1002 = verf.f32.pop %v938
        %v1003 = verf.f32.pop %v939
        %v1004 = verf.f32.pop %v940
        %v1005 = verf.f32.pop %v941
        %v1006 = verf.f32.pop %v942
        %v1007 = verf.f32.pop %v943
        %v1008 = verf.f32.pop %v944
        %v1009 = verf.f32.pop %v945
        %v1010 = verf.f32.pop %v946
        %v1011 = verf.f32.pop %v947
        %v1012 = verf.f32.pop %v948
        %v1013 = verf.f32.pop %v949
        %v1014 = verf.f32.pop %v950
        %v1015 = verf.f32.pop %v951
        %v1016 = verf.f32.pop %v952
        %v1017 = verf.f32.pop %v953
        %v1018 = verf.f32.pop %v954
        %v1019 = verf.f32.pop %v955
        %v1020 = verf.f32.pop %v956
        %v1021 = verf.f32.pop %v957
        %v1022 = verf.f32.pop %v958
        %v1023 = verf.f32.pop %v959
        %v1024 = verf.f32.pop %v960
        %v1025 = verf.f32.pop %v961
        %v1026 = verf.f32.pop %v962
        %v1027 = verf.f32.pop %v963
        %v1028 = verf.f32.pop %v964
        %v1029 = vadd.f32 %v965, 1.0
        %v1030 = vadd.f32 %v966, 1.0
        %v1031 = vadd.f32 %v967, 1.0
        %v1032 = vadd.f32 %v968, 1.0
        %v1033 = vadd.f32 %v969, 1.0
        %v1034 = vadd.f32 %v970, 1.0
        %v1035 = vadd.f32 %v971, 1.0
        %v1036 = vadd.f32 %v972, 1.0
        %v1037 = vadd.f32 %v973, 1.0
        %v1038 = vadd.f32 %v974, 1.0
        %v1039 = vadd.f32 %v975, 1.0
        %v1040 = vadd.f32 %v976, 1.0
        %v1041 = vadd.f32 %v977, 1.0
        %v1042 = vadd.f32 %v978, 1.0
        %v1043 = vadd.f32 %v979, 1.0
        %v1044 = vadd.f32 %v980, 1.0
        %v1045 = vadd.f32 %v981, 1.0
        %v1046 = vadd.f32 %v982, 1.0
        %v1047 = vadd.f32 %v983, 1.0
        %v1048 = vadd.f32 %v984, 1.0
        %v1049 = vadd.f32 %v985, 1.0
        %v1050 = vadd.f32 %v986, 1.0
        %v1051 = vadd.f32 %v987, 1.0
        %v1052 = vadd.f32 %v988, 1.0
        %v1053 = vadd.f32 %v989, 1.0
        %v1054 = vadd.f32 %v990, 1.0
        %v1055 = vadd.f32 %v991, 1.0
        %v1056 = vadd.f32 %v992, 1.0
        %v1057 = vadd.f32 %v993, 1.0
        %v1058 = vadd.f32 %v994, 1.0
        %v1059 = vadd.f32 %v995, 1.0
        %v1060 = vadd.f32 %v996, 1.0
        %v1061 = vadd.f32 %v997, 1.0
        %v1062 = vadd.f32 %v998, 1.0
        %v1063 = vadd.f32 %v999, 1.0
        %v1064 = vadd.f32 %v1000, 1.0
        %v1065 = vadd.f32 %v1001, 1.0
        %v1066 = vadd.f32 %v1002, 1.0
        %v1067 = vadd.f32 %v1003, 1.0
        %v1068 = vadd.f32 %v1004, 1.0
        %v1069 = vadd.f32 %v1005, 1.0
        %v1070 = vadd.f32 %v1006, 1.0
        %v1071 = vadd.f32 %v1007, 1.0
        %v1072 = vadd.f32 %v1008, 1.0
        %v1073 = vadd.f32 %v1009, 1.0
        %v1074 = vadd.f32 %v1010, 1.0
        %v1075 = vadd.f32 %v1011, 1.0
        %v1076 = vadd.f32 %v1012, 1.0
        %v1077 = vadd.f32 %v1013, 1.0
        %v1078 = vadd.f32 %v1014, 1.0
        %v1079 = vadd.f32 %v1015, 1.0
        %v1080 = vadd.f32 %v1016, 1.0
        %v1081 = vadd.f32 %v1017, 1.0
        %v1082 = vadd.f32 %v1018, 1.0
        %v1083 = vadd.f32 %v1019, 1.0
        %v1084 = vadd.f32 %v1020, 1.0
        %v1085 = vadd.f32 %v1021, 1.0
        %v1086 = vadd.f32 %v1022, 1.0
        %v1087 = vadd.f32 %v1023, 1.0
        %v1088 = vadd.f32 %v1024, 1.0
        %v1089 = vadd.f32 %v1025, 1.0
        %v1090 = vadd.f32 %v1026, 1.0
        %v1091 = vadd.f32 %v1027, 1.0
        %v1092 = vadd.f32 %v1028, 1.0
        %v1093 = vmul.f32 %v837, %v1029
        %v1094 = vmul.f32 %v838, %v1030
        %v1095 = vmul.f32 %v839, %v1031
        %v1096 = vmul.f32 %v840, %v1032
        %v1097 = vmul.f32 %v841, %v1033
        %v1098 = vmul.f32 %v842, %v1034
        %v1099 = vmul.f32 %v843, %v1035
        %v1100 = vmul.f32 %v844, %v1036
        %v1101 = vmul.f32 %v845, %v1037
        %v1102 = vmul.f32 %v846, %v1038
        %v1103 = vmul.f32 %v847, %v1039
        %v1104 = vmul.f32 %v848, %v1040
        %v1105 = vmul.f32 %v849, %v1041
        %v1106 = vmul.f32 %v850, %v1042
        %v1107 = vmul.f32 %v851, %v1043
        %v1108 = vmul.f32 %v852, %v1044
        %v1109 = vmul.f32 %v853, %v1045
        %v1110 = vmul.f32 %v854, %v1046
        %v1111 = vmul.f32 %v855, %v1047
        %v1112 = vmul.f32 %v856, %v1048
        %v1113 = vmul.f32 %v857, %v1049
        %v1114 = vmul.f32 %v858, %v1050
        %v1115 = vmul.f32 %v859, %v1051
        %v1116 = vmul.f32 %v860, %v1052
        %v1117 = vmul.f32 %v861, %v1053
        %v1118 = vmul.f32 %v862, %v1054
        %v1119 = vmul.f32 %v863, %v1055
        %v1120 = vmul.f32 %v864, %v1056
        %v1121 = vmul.f32 %v865, %v1057
        %v1122 = vmul.f32 %v866, %v1058
        %v1123 = vmul.f32 %v867, %v1059
        %v1124 = vmul.f32 %v868, %v1060
        %v1125 = vmul.f32 %v869, %v1061
        %v1126 = vmul.f32 %v870, %v1062
        %v1127 = vmul.f32 %v871, %v1063
        %v1128 = vmul.f32 %v872, %v1064
        %v1129 = vmul.f32 %v873, %v1065
        %v1130 = vmul.f32 %v874, %v1066
        %v1131 = vmul.f32 %v875, %v1067
        %v1132 = vmul.f32 %v876, %v1068
        %v1133 = vmul.f32 %v877, %v1069
        %v1134 = vmul.f32 %v878, %v1070
        %v1135 = vmul.f32 %v879, %v1071
        %v1136 = vmul.f32 %v880, %v1072
        %v1137 = vmul.f32 %v881, %v1073
        %v1138 = vmul.f32 %v882, %v1074
        %v1139 = vmul.f32 %v883, %v1075
        %v1140 = vmul.f32 %v884, %v1076
        %v1141 = vmul.f32 %v885, %v1077
        %v1142 = vmul.f32 %v886, %v1078
        %v1143 = vmul.f32 %v887, %v1079
        %v1144 = vmul.f32 %v888, %v1080
        %v1145 = vmul.f32 %v889, %v1081
        %v1146 = vmul.f32 %v890, %v1082
        %v1147 = vmul.f32 %v891, %v1083
        %v1148 = vmul.f32 %v892, %v1084
        %v1149 = vmul.f32 %v893, %v1085
        %v1150 = vmul.f32 %v894, %v1086
        %v1151 = vmul.f32 %v895, %v1087
        %v1152 = vmul.f32 %v896, %v1088
        %v1153 = vmul.f32 %v897, %v1089
        %v1154 = vmul.f32 %v898, %v1090
        %v1155 = vmul.f32 %v899, %v1091
        %v1156 = vmul.f32 %v900, %v1092
        %v1157 = vld [vmem:[#allocation5] sm:$0xff]
        %v1158 = vld [vmem:[#allocation5 + $0x8] sm:$0xff]
        %v1159 = vld [vmem:[#allocation5 + $0x10] sm:$0xff]
        %v1160 = vld [vmem:[#allocation5 + $0x18] sm:$0xff]
        %v1161 = vld [vmem:[#allocation5 + $0x20] sm:$0xff]
        %v1162 = vld [vmem:[#allocation5 + $0x28] sm:$0xff]
        %v1163 = vld [vmem:[#allocation5 + $0x30] sm:$0xff]
        %v1164 = vld [vmem:[#allocation5 + $0x38] sm:$0xff]
        %v1165 = vld [vmem:[#allocation5 + $0x40] sm:$0xff]
        %v1166 = vld [vmem:[#allocation5 + $0x48] sm:$0xff]
        %v1167 = vld [vmem:[#allocation5 + $0x50] sm:$0xff]
        %v1168 = vld [vmem:[#allocation5 + $0x58] sm:$0xff]
        %v1169 = vld [vmem:[#allocation5 + $0x60] sm:$0xff]
        %v1170 = vld [vmem:[#allocation5 + $0x68] sm:$0xff]
        %v1171 = vld [vmem:[#allocation5 + $0x70] sm:$0xff]
        %v1172 = vld [vmem:[#allocation5 + $0x78] sm:$0xff]
        %v1173 = vld [vmem:[#allocation5 + $0x80] sm:$0xff]
        %v1174 = vld [vmem:[#allocation5 + $0x88] sm:$0xff]
        %v1175 = vld [vmem:[#allocation5 + $0x90] sm:$0xff]
        %v1176 = vld [vmem:[#allocation5 + $0x98] sm:$0xff]
        %v1177 = vld [vmem:[#allocation5 + $0xa0] sm:$0xff]
        %v1178 = vld [vmem:[#allocation5 + $0xa8] sm:$0xff]
        %v1179 = vld [vmem:[#allocation5 + $0xb0] sm:$0xff]
        %v1180 = vld [vmem:[#allocation5 + $0xb8] sm:$0xff]
        %v1181 = vld [vmem:[#allocation5 + $0xc0] sm:$0xff]
        %v1182 = vld [vmem:[#allocation5 + $0xc8] sm:$0xff]
        %v1183 = vld [vmem:[#allocation5 + $0xd0] sm:$0xff]
        %v1184 = vld [vmem:[#allocation5 + $0xd8] sm:$0xff]
        %v1185 = vld [vmem:[#allocation5 + $0xe0] sm:$0xff]
        %v1186 = vld [vmem:[#allocation5 + $0xe8] sm:$0xff]
        %v1187 = vld [vmem:[#allocation5 + $0xf0] sm:$0xff]
        %v1188 = vld [vmem:[#allocation5 + $0xf8] sm:$0xff]
        %v1189 = vld [vmem:[#allocation5 + $0x100] sm:$0xff]
        %v1190 = vld [vmem:[#allocation5 + $0x108] sm:$0xff]
        %v1191 = vld [vmem:[#allocation5 + $0x110] sm:$0xff]
        %v1192 = vld [vmem:[#allocation5 + $0x118] sm:$0xff]
        %v1193 = vld [vmem:[#allocation5 + $0x120] sm:$0xff]
        %v1194 = vld [vmem:[#allocation5 + $0x128] sm:$0xff]
        %v1195 = vld [vmem:[#allocation5 + $0x130] sm:$0xff]
        %v1196 = vld [vmem:[#allocation5 + $0x138] sm:$0xff]
        %v1197 = vld [vmem:[#allocation5 + $0x140] sm:$0xff]
        %v1198 = vld [vmem:[#allocation5 + $0x148] sm:$0xff]
        %v1199 = vld [vmem:[#allocation5 + $0x150] sm:$0xff]
        %v1200 = vld [vmem:[#allocation5 + $0x158] sm:$0xff]
        %v1201 = vld [vmem:[#allocation5 + $0x160] sm:$0xff]
        %v1202 = vld [vmem:[#allocation5 + $0x168] sm:$0xff]
        %v1203 = vld [vmem:[#allocation5 + $0x170] sm:$0xff]
        %v1204 = vld [vmem:[#allocation5 + $0x178] sm:$0xff]
        %v1205 = vld [vmem:[#allocation5 + $0x180] sm:$0xff]
        %v1206 = vld [vmem:[#allocation5 + $0x188] sm:$0xff]
        %v1207 = vld [vmem:[#allocation5 + $0x190] sm:$0xff]
        %v1208 = vld [vmem:[#allocation5 + $0x198] sm:$0xff]
        %v1209 = vld [vmem:[#allocation5 + $0x1a0] sm:$0xff]
        %v1210 = vld [vmem:[#allocation5 + $0x1a8] sm:$0xff]
        %v1211 = vld [vmem:[#allocation5 + $0x1b0] sm:$0xff]
        %v1212 = vld [vmem:[#allocation5 + $0x1b8] sm:$0xff]
        %v1213 = vld [vmem:[#allocation5 + $0x1c0] sm:$0xff]
        %v1214 = vld [vmem:[#allocation5 + $0x1c8] sm:$0xff]
        %v1215 = vld [vmem:[#allocation5 + $0x1d0] sm:$0xff]
        %v1216 = vld [vmem:[#allocation5 + $0x1d8] sm:$0xff]
        %v1217 = vld [vmem:[#allocation5 + $0x1e0] sm:$0xff]
        %v1218 = vld [vmem:[#allocation5 + $0x1e8] sm:$0xff]
        %v1219 = vld [vmem:[#allocation5 + $0x1f0] sm:$0xff]
        %v1220 = vld [vmem:[#allocation5 + $0x1f8] sm:$0xff]
        %v1221 = vld [vmem:[#allocation5 + $0x200] sm:$0xff]
        %v1222 = vld [vmem:[#allocation5 + $0x208] sm:$0xff]
        %v1223 = vld [vmem:[#allocation5 + $0x210] sm:$0xff]
        %v1224 = vld [vmem:[#allocation5 + $0x218] sm:$0xff]
        %v1225 = vld [vmem:[#allocation5 + $0x220] sm:$0xff]
        %v1226 = vld [vmem:[#allocation5 + $0x228] sm:$0xff]
        %v1227 = vld [vmem:[#allocation5 + $0x230] sm:$0xff]
        %v1228 = vld [vmem:[#allocation5 + $0x238] sm:$0xff]
        %v1229 = vld [vmem:[#allocation5 + $0x240] sm:$0xff]
        %v1230 = vld [vmem:[#allocation5 + $0x248] sm:$0xff]
        %v1231 = vld [vmem:[#allocation5 + $0x250] sm:$0xff]
        %v1232 = vld [vmem:[#allocation5 + $0x258] sm:$0xff]
        %v1233 = vld [vmem:[#allocation5 + $0x260] sm:$0xff]
        %v1234 = vld [vmem:[#allocation5 + $0x268] sm:$0xff]
        %v1235 = vld [vmem:[#allocation5 + $0x270] sm:$0xff]
        %v1236 = vld [vmem:[#allocation5 + $0x278] sm:$0xff]
        %v1237 = vld [vmem:[#allocation5 + $0x280] sm:$0xff]
        %v1238 = vld [vmem:[#allocation5 + $0x288] sm:$0xff]
        %v1239 = vld [vmem:[#allocation5 + $0x290] sm:$0xff]
        %v1240 = vld [vmem:[#allocation5 + $0x298] sm:$0xff]
        %v1241 = vld [vmem:[#allocation5 + $0x2a0] sm:$0xff]
        %v1242 = vld [vmem:[#allocation5 + $0x2a8] sm:$0xff]
        %v1243 = vld [vmem:[#allocation5 + $0x2b0] sm:$0xff]
        %v1244 = vld [vmem:[#allocation5 + $0x2b8] sm:$0xff]
        %v1245 = vld [vmem:[#allocation5 + $0x2c0] sm:$0xff]
        %v1246 = vld [vmem:[#allocation5 + $0x2c8] sm:$0xff]
        %v1247 = vld [vmem:[#allocation5 + $0x2d0] sm:$0xff]
        %v1248 = vld [vmem:[#allocation5 + $0x2d8] sm:$0xff]
        %v1249 = vld [vmem:[#allocation5 + $0x2e0] sm:$0xff]
        %v1250 = vld [vmem:[#allocation5 + $0x2e8] sm:$0xff]
        %v1251 = vld [vmem:[#allocation5 + $0x2f0] sm:$0xff]
        %v1252 = vld [vmem:[#allocation5 + $0x2f8] sm:$0xff]
        %v1253 = vpack.c.bf16 %v1095, %v1093
        %v1254 = vpack.c.bf16 %v1096, %v1094
        %v1255 = vpack.c.bf16 %v1099, %v1097
        %v1256 = vpack.c.bf16 %v1100, %v1098
        %v1257 = vpack.c.bf16 %v1103, %v1101
        %v1258 = vpack.c.bf16 %v1104, %v1102
        %v1259 = vpack.c.bf16 %v1107, %v1105
        %v1260 = vpack.c.bf16 %v1108, %v1106
        %v1261 = vpack.c.bf16 %v1111, %v1109
        %v1262 = vpack.c.bf16 %v1112, %v1110
        %v1263 = vpack.c.bf16 %v1115, %v1113
        %v1264 = vpack.c.bf16 %v1116, %v1114
        %v1265 = vpack.c.bf16 %v1119, %v1117
        %v1266 = vpack.c.bf16 %v1120, %v1118
        %v1267 = vpack.c.bf16 %v1123, %v1121
        %v1268 = vpack.c.bf16 %v1124, %v1122
        %v1269 = vpack.c.bf16 %v1127, %v1125
        %v1270 = vpack.c.bf16 %v1128, %v1126
        %v1271 = vpack.c.bf16 %v1131, %v1129
        %v1272 = vpack.c.bf16 %v1132, %v1130
        %v1273 = vpack.c.bf16 %v1135, %v1133
        %v1274 = vpack.c.bf16 %v1136, %v1134
        %v1275 = vpack.c.bf16 %v1139, %v1137
        %v1276 = vpack.c.bf16 %v1140, %v1138
        %v1277 = vpack.c.bf16 %v1143, %v1141
        %v1278 = vpack.c.bf16 %v1144, %v1142
        %v1279 = vpack.c.bf16 %v1147, %v1145
        %v1280 = vpack.c.bf16 %v1148, %v1146
        %v1281 = vpack.c.bf16 %v1151, %v1149
        %v1282 = vpack.c.bf16 %v1152, %v1150
        %v1283 = vpack.c.bf16 %v1155, %v1153
        %v1284 = vpack.c.bf16 %v1156, %v1154
        %v1285 = vld [vmem:[%s4] sm:$0xff]
        %v1286 = vld [vmem:[%s4 + $0x8] sm:$0xff]
        %v1287 = vld [vmem:[%s4 + $0x10] sm:$0xff]
        %v1288 = vld [vmem:[%s4 + $0x18] sm:$0xff]
        %v1289 = vld [vmem:[%s4 + $0x20] sm:$0xff]
        %v1290 = vld [vmem:[%s4 + $0x28] sm:$0xff]
        %v1291 = vld [vmem:[%s4 + $0x30] sm:$0xff]
        %v1292 = vld [vmem:[%s4 + $0x38] sm:$0xff]
        %v1293 = vld [vmem:[%s4 + $0x40] sm:$0xff]
        %v1294 = vld [vmem:[%s4 + $0x48] sm:$0xff]
        %v1295 = vld [vmem:[%s4 + $0x50] sm:$0xff]
        %v1296 = vld [vmem:[%s4 + $0x58] sm:$0xff]
        %v1297 = vld [vmem:[%s4 + $0x60] sm:$0xff]
        %v1298 = vld [vmem:[%s4 + $0x68] sm:$0xff]
        %v1299 = vld [vmem:[%s4 + $0x70] sm:$0xff]
        %v1300 = vld [vmem:[%s4 + $0x78] sm:$0xff]
        %v1301 = vld [vmem:[%s4 + $0x80] sm:$0xff]
        %v1302 = vld [vmem:[%s4 + $0x88] sm:$0xff]
        %v1303 = vld [vmem:[%s4 + $0x90] sm:$0xff]
        %v1304 = vld [vmem:[%s4 + $0x98] sm:$0xff]
        %v1305 = vld [vmem:[%s4 + $0xa0] sm:$0xff]
        %v1306 = vld [vmem:[%s4 + $0xa8] sm:$0xff]
        %v1307 = vld [vmem:[%s4 + $0xb0] sm:$0xff]
        %v1308 = vld [vmem:[%s4 + $0xb8] sm:$0xff]
        %v1309 = vld [vmem:[%s4 + $0xc0] sm:$0xff]
        %v1310 = vld [vmem:[%s4 + $0xc8] sm:$0xff]
        %v1311 = vld [vmem:[%s4 + $0xd0] sm:$0xff]
        %v1312 = vld [vmem:[%s4 + $0xd8] sm:$0xff]
        %v1313 = vld [vmem:[%s4 + $0xe0] sm:$0xff]
        %v1314 = vld [vmem:[%s4 + $0xe8] sm:$0xff]
        %v1315 = vld [vmem:[%s4 + $0xf0] sm:$0xff]
        %v1316 = vld [vmem:[%s4 + $0xf8] sm:$0xff]
        %v1317 = vld [vmem:[%s4 + $0x100] sm:$0xff]
        %v1318 = vld [vmem:[%s4 + $0x108] sm:$0xff]
        %v1319 = vld [vmem:[%s4 + $0x110] sm:$0xff]
        %v1320 = vld [vmem:[%s4 + $0x118] sm:$0xff]
        %v1321 = vld [vmem:[%s4 + $0x120] sm:$0xff]
        %v1322 = vld [vmem:[%s4 + $0x128] sm:$0xff]
        %v1323 = vld [vmem:[%s4 + $0x130] sm:$0xff]
        %v1324 = vld [vmem:[%s4 + $0x138] sm:$0xff]
        %v1325 = vld [vmem:[%s4 + $0x140] sm:$0xff]
        %v1326 = vld [vmem:[%s4 + $0x148] sm:$0xff]
        %v1327 = vld [vmem:[%s4 + $0x150] sm:$0xff]
        %v1328 = vld [vmem:[%s4 + $0x158] sm:$0xff]
        %v1329 = vld [vmem:[%s4 + $0x160] sm:$0xff]
        %v1330 = vld [vmem:[%s4 + $0x168] sm:$0xff]
        %v1331 = vld [vmem:[%s4 + $0x170] sm:$0xff]
        %v1332 = vld [vmem:[%s4 + $0x178] sm:$0xff]
        %v1333 = vld [vmem:[%s4 + $0x180] sm:$0xff]
        %v1334 = vld [vmem:[%s4 + $0x188] sm:$0xff]
        %v1335 = vld [vmem:[%s4 + $0x190] sm:$0xff]
        %v1336 = vld [vmem:[%s4 + $0x198] sm:$0xff]
        %v1337 = vld [vmem:[%s4 + $0x1a0] sm:$0xff]
        %v1338 = vld [vmem:[%s4 + $0x1a8] sm:$0xff]
        %v1339 = vld [vmem:[%s4 + $0x1b0] sm:$0xff]
        %v1340 = vld [vmem:[%s4 + $0x1b8] sm:$0xff]
        %v1341 = vld [vmem:[%s4 + $0x1c0] sm:$0xff]
        %v1342 = vld [vmem:[%s4 + $0x1c8] sm:$0xff]
        %v1343 = vld [vmem:[%s4 + $0x1d0] sm:$0xff]
        %v1344 = vld [vmem:[%s4 + $0x1d8] sm:$0xff]
        %v1345 = vld [vmem:[%s4 + $0x1e0] sm:$0xff]
        %v1346 = vld [vmem:[%s4 + $0x1e8] sm:$0xff]
        %v1347 = vld [vmem:[%s4 + $0x1f0] sm:$0xff]
        %v1348 = vld [vmem:[%s4 + $0x1f8] sm:$0xff]
        %v1349 = vld [vmem:[%s4 + $0x200] sm:$0xff]
        %v1350 = vld [vmem:[%s4 + $0x208] sm:$0xff]
        %v1351 = vld [vmem:[%s4 + $0x210] sm:$0xff]
        %v1352 = vld [vmem:[%s4 + $0x218] sm:$0xff]
        %v1353 = vld [vmem:[%s4 + $0x220] sm:$0xff]
        %v1354 = vld [vmem:[%s4 + $0x228] sm:$0xff]
        %v1355 = vld [vmem:[%s4 + $0x230] sm:$0xff]
        %v1356 = vld [vmem:[%s4 + $0x238] sm:$0xff]
        %v1357 = vld [vmem:[%s4 + $0x240] sm:$0xff]
        %v1358 = vld [vmem:[%s4 + $0x248] sm:$0xff]
        %v1359 = vld [vmem:[%s4 + $0x250] sm:$0xff]
        %v1360 = vld [vmem:[%s4 + $0x258] sm:$0xff]
        %v1361 = vld [vmem:[%s4 + $0x260] sm:$0xff]
        %v1362 = vld [vmem:[%s4 + $0x268] sm:$0xff]
        %v1363 = vld [vmem:[%s4 + $0x270] sm:$0xff]
        %v1364 = vld [vmem:[%s4 + $0x278] sm:$0xff]
        %v1365 = vld [vmem:[%s4 + $0x280] sm:$0xff]
        %v1366 = vld [vmem:[%s4 + $0x288] sm:$0xff]
        %v1367 = vld [vmem:[%s4 + $0x290] sm:$0xff]
        %v1368 = vld [vmem:[%s4 + $0x298] sm:$0xff]
        %v1369 = vld [vmem:[%s4 + $0x2a0] sm:$0xff]
        %v1370 = vld [vmem:[%s4 + $0x2a8] sm:$0xff]
        %v1371 = vld [vmem:[%s4 + $0x2b0] sm:$0xff]
        %v1372 = vld [vmem:[%s4 + $0x2b8] sm:$0xff]
        %v1373 = vld [vmem:[%s4 + $0x2c0] sm:$0xff]
        %v1374 = vld [vmem:[%s4 + $0x2c8] sm:$0xff]
        %v1375 = vld [vmem:[%s4 + $0x2d0] sm:$0xff]
        %v1376 = vld [vmem:[%s4 + $0x2d8] sm:$0xff]
        %v1377 = vld [vmem:[%s4 + $0x2e0] sm:$0xff]
        %v1378 = vld [vmem:[%s4 + $0x2e8] sm:$0xff]
        %v1379 = vld [vmem:[%s4 + $0x2f0] sm:$0xff]
        %v1380 = vld [vmem:[%s4 + $0x2f8] sm:$0xff]
        %1382 = vset.pattern.permute.xlu0 0
        %1383 = vperm.xlu0 %1382, %v1285
        %v1384 = vpop.permute.xlu0 %1383
        %1387 = vset.pattern.permute.xlu0 0
        %1388 = vperm.xlu0 %1387, %v1286
        %v1389 = vpop.permute.xlu0 %1388
        %1392 = vset.pattern.permute.xlu0 0
        %1393 = vperm.xlu0 %1392, %v1287
        %v1394 = vpop.permute.xlu0 %1393
        %1397 = vset.pattern.permute.xlu0 0
        %1398 = vperm.xlu0 %1397, %v1288
        %v1399 = vpop.permute.xlu0 %1398
        %1402 = vset.pattern.permute.xlu0 0
        %1403 = vperm.xlu0 %1402, %v1289
        %v1404 = vpop.permute.xlu0 %1403
        %1407 = vset.pattern.permute.xlu0 0
        %1408 = vperm.xlu0 %1407, %v1290
        %v1409 = vpop.permute.xlu0 %1408
        %1412 = vset.pattern.permute.xlu0 0
        %1413 = vperm.xlu0 %1412, %v1291
        %v1414 = vpop.permute.xlu0 %1413
        %1417 = vset.pattern.permute.xlu0 0
        %1418 = vperm.xlu0 %1417, %v1292
        %v1419 = vpop.permute.xlu0 %1418
        %1422 = vset.pattern.permute.xlu0 0
        %1423 = vperm.xlu0 %1422, %v1293
        %v1424 = vpop.permute.xlu0 %1423
        %1427 = vset.pattern.permute.xlu0 0
        %1428 = vperm.xlu0 %1427, %v1294
        %v1429 = vpop.permute.xlu0 %1428
        %1432 = vset.pattern.permute.xlu0 0
        %1433 = vperm.xlu0 %1432, %v1295
        %v1434 = vpop.permute.xlu0 %1433
        %1437 = vset.pattern.permute.xlu0 0
        %1438 = vperm.xlu0 %1437, %v1296
        %v1439 = vpop.permute.xlu0 %1438
        %1442 = vset.pattern.permute.xlu0 0
        %1443 = vperm.xlu0 %1442, %v1297
        %v1444 = vpop.permute.xlu0 %1443
        %1447 = vset.pattern.permute.xlu0 0
        %1448 = vperm.xlu0 %1447, %v1298
        %v1449 = vpop.permute.xlu0 %1448
        %1452 = vset.pattern.permute.xlu0 0
        %1453 = vperm.xlu0 %1452, %v1299
        %v1454 = vpop.permute.xlu0 %1453
        %1457 = vset.pattern.permute.xlu0 0
        %1458 = vperm.xlu0 %1457, %v1300
        %v1459 = vpop.permute.xlu0 %1458
        %1462 = vset.pattern.permute.xlu0 0
        %1463 = vperm.xlu0 %1462, %v1301
        %v1464 = vpop.permute.xlu0 %1463
        %1467 = vset.pattern.permute.xlu0 0
        %1468 = vperm.xlu0 %1467, %v1302
        %v1469 = vpop.permute.xlu0 %1468
        %1472 = vset.pattern.permute.xlu0 0
        %1473 = vperm.xlu0 %1472, %v1303
        %v1474 = vpop.permute.xlu0 %1473
        %1477 = vset.pattern.permute.xlu0 0
        %1478 = vperm.xlu0 %1477, %v1304
        %v1479 = vpop.permute.xlu0 %1478
        %1482 = vset.pattern.permute.xlu0 0
        %1483 = vperm.xlu0 %1482, %v1305
        %v1484 = vpop.permute.xlu0 %1483
        %1487 = vset.pattern.permute.xlu0 0
        %1488 = vperm.xlu0 %1487, %v1306
        %v1489 = vpop.permute.xlu0 %1488
        %1492 = vset.pattern.permute.xlu0 0
        %1493 = vperm.xlu0 %1492, %v1307
        %v1494 = vpop.permute.xlu0 %1493
        %1497 = vset.pattern.permute.xlu0 0
        %1498 = vperm.xlu0 %1497, %v1308
        %v1499 = vpop.permute.xlu0 %1498
        %1502 = vset.pattern.permute.xlu0 0
        %1503 = vperm.xlu0 %1502, %v1309
        %v1504 = vpop.permute.xlu0 %1503
        %1507 = vset.pattern.permute.xlu0 0
        %1508 = vperm.xlu0 %1507, %v1310
        %v1509 = vpop.permute.xlu0 %1508
        %1512 = vset.pattern.permute.xlu0 0
        %1513 = vperm.xlu0 %1512, %v1311
        %v1514 = vpop.permute.xlu0 %1513
        %1517 = vset.pattern.permute.xlu0 0
        %1518 = vperm.xlu0 %1517, %v1312
        %v1519 = vpop.permute.xlu0 %1518
        %1522 = vset.pattern.permute.xlu0 0
        %1523 = vperm.xlu0 %1522, %v1313
        %v1524 = vpop.permute.xlu0 %1523
        %1527 = vset.pattern.permute.xlu0 0
        %1528 = vperm.xlu0 %1527, %v1314
        %v1529 = vpop.permute.xlu0 %1528
        %1532 = vset.pattern.permute.xlu0 0
        %1533 = vperm.xlu0 %1532, %v1315
        %v1534 = vpop.permute.xlu0 %1533
        %1537 = vset.pattern.permute.xlu0 0
        %1538 = vperm.xlu0 %1537, %v1316
        %v1539 = vpop.permute.xlu0 %1538
        %1542 = vset.pattern.permute.xlu0 0
        %1543 = vperm.xlu0 %1542, %v1317
        %v1544 = vpop.permute.xlu0 %1543
        %1547 = vset.pattern.permute.xlu0 0
        %1548 = vperm.xlu0 %1547, %v1318
        %v1549 = vpop.permute.xlu0 %1548
        %1552 = vset.pattern.permute.xlu0 0
        %1553 = vperm.xlu0 %1552, %v1319
        %v1554 = vpop.permute.xlu0 %1553
        %1557 = vset.pattern.permute.xlu0 0
        %1558 = vperm.xlu0 %1557, %v1320
        %v1559 = vpop.permute.xlu0 %1558
        %1562 = vset.pattern.permute.xlu0 0
        %1563 = vperm.xlu0 %1562, %v1321
        %v1564 = vpop.permute.xlu0 %1563
        %1567 = vset.pattern.permute.xlu0 0
        %1568 = vperm.xlu0 %1567, %v1322
        %v1569 = vpop.permute.xlu0 %1568
        %1572 = vset.pattern.permute.xlu0 0
        %1573 = vperm.xlu0 %1572, %v1323
        %v1574 = vpop.permute.xlu0 %1573
        %1577 = vset.pattern.permute.xlu0 0
        %1578 = vperm.xlu0 %1577, %v1324
        %v1579 = vpop.permute.xlu0 %1578
        %1582 = vset.pattern.permute.xlu0 0
        %1583 = vperm.xlu0 %1582, %v1325
        %v1584 = vpop.permute.xlu0 %1583
        %1587 = vset.pattern.permute.xlu0 0
        %1588 = vperm.xlu0 %1587, %v1326
        %v1589 = vpop.permute.xlu0 %1588
        %1592 = vset.pattern.permute.xlu0 0
        %1593 = vperm.xlu0 %1592, %v1327
        %v1594 = vpop.permute.xlu0 %1593
        %1597 = vset.pattern.permute.xlu0 0
        %1598 = vperm.xlu0 %1597, %v1328
        %v1599 = vpop.permute.xlu0 %1598
        %1602 = vset.pattern.permute.xlu0 0
        %1603 = vperm.xlu0 %1602, %v1329
        %v1604 = vpop.permute.xlu0 %1603
        %1607 = vset.pattern.permute.xlu0 0
        %1608 = vperm.xlu0 %1607, %v1330
        %v1609 = vpop.permute.xlu0 %1608
        %1612 = vset.pattern.permute.xlu0 0
        %1613 = vperm.xlu0 %1612, %v1331
        %v1614 = vpop.permute.xlu0 %1613
        %1617 = vset.pattern.permute.xlu0 0
        %1618 = vperm.xlu0 %1617, %v1332
        %v1619 = vpop.permute.xlu0 %1618
        %1622 = vset.pattern.permute.xlu0 0
        %1623 = vperm.xlu0 %1622, %v1333
        %v1624 = vpop.permute.xlu0 %1623
        %1627 = vset.pattern.permute.xlu0 0
        %1628 = vperm.xlu0 %1627, %v1334
        %v1629 = vpop.permute.xlu0 %1628
        %1632 = vset.pattern.permute.xlu0 0
        %1633 = vperm.xlu0 %1632, %v1335
        %v1634 = vpop.permute.xlu0 %1633
        %1637 = vset.pattern.permute.xlu0 0
        %1638 = vperm.xlu0 %1637, %v1336
        %v1639 = vpop.permute.xlu0 %1638
        %1642 = vset.pattern.permute.xlu0 0
        %1643 = vperm.xlu0 %1642, %v1337
        %v1644 = vpop.permute.xlu0 %1643
        %1647 = vset.pattern.permute.xlu0 0
        %1648 = vperm.xlu0 %1647, %v1338
        %v1649 = vpop.permute.xlu0 %1648
        %1652 = vset.pattern.permute.xlu0 0
        %1653 = vperm.xlu0 %1652, %v1339
        %v1654 = vpop.permute.xlu0 %1653
        %1657 = vset.pattern.permute.xlu0 0
        %1658 = vperm.xlu0 %1657, %v1340
        %v1659 = vpop.permute.xlu0 %1658
        %1662 = vset.pattern.permute.xlu0 0
        %1663 = vperm.xlu0 %1662, %v1341
        %v1664 = vpop.permute.xlu0 %1663
        %1667 = vset.pattern.permute.xlu0 0
        %1668 = vperm.xlu0 %1667, %v1342
        %v1669 = vpop.permute.xlu0 %1668
        %1672 = vset.pattern.permute.xlu0 0
        %1673 = vperm.xlu0 %1672, %v1343
        %v1674 = vpop.permute.xlu0 %1673
        %1677 = vset.pattern.permute.xlu0 0
        %1678 = vperm.xlu0 %1677, %v1344
        %v1679 = vpop.permute.xlu0 %1678
        %1682 = vset.pattern.permute.xlu0 0
        %1683 = vperm.xlu0 %1682, %v1345
        %v1684 = vpop.permute.xlu0 %1683
        %1687 = vset.pattern.permute.xlu0 0
        %1688 = vperm.xlu0 %1687, %v1346
        %v1689 = vpop.permute.xlu0 %1688
        %1692 = vset.pattern.permute.xlu0 0
        %1693 = vperm.xlu0 %1692, %v1347
        %v1694 = vpop.permute.xlu0 %1693
        %1697 = vset.pattern.permute.xlu0 0
        %1698 = vperm.xlu0 %1697, %v1348
        %v1699 = vpop.permute.xlu0 %1698
        %1702 = vset.pattern.permute.xlu0 0
        %1703 = vperm.xlu0 %1702, %v1349
        %v1704 = vpop.permute.xlu0 %1703
        %1707 = vset.pattern.permute.xlu0 0
        %1708 = vperm.xlu0 %1707, %v1350
        %v1709 = vpop.permute.xlu0 %1708
        %1712 = vset.pattern.permute.xlu0 0
        %1713 = vperm.xlu0 %1712, %v1351
        %v1714 = vpop.permute.xlu0 %1713
        %1717 = vset.pattern.permute.xlu0 0
        %1718 = vperm.xlu0 %1717, %v1352
        %v1719 = vpop.permute.xlu0 %1718
        %1722 = vset.pattern.permute.xlu0 0
        %1723 = vperm.xlu0 %1722, %v1353
        %v1724 = vpop.permute.xlu0 %1723
        %1727 = vset.pattern.permute.xlu0 0
        %1728 = vperm.xlu0 %1727, %v1354
        %v1729 = vpop.permute.xlu0 %1728
        %1732 = vset.pattern.permute.xlu0 0
        %1733 = vperm.xlu0 %1732, %v1355
        %v1734 = vpop.permute.xlu0 %1733
        %1737 = vset.pattern.permute.xlu0 0
        %1738 = vperm.xlu0 %1737, %v1356
        %v1739 = vpop.permute.xlu0 %1738
        %1742 = vset.pattern.permute.xlu0 0
        %1743 = vperm.xlu0 %1742, %v1357
        %v1744 = vpop.permute.xlu0 %1743
        %1747 = vset.pattern.permute.xlu0 0
        %1748 = vperm.xlu0 %1747, %v1358
        %v1749 = vpop.permute.xlu0 %1748
        %1752 = vset.pattern.permute.xlu0 0
        %1753 = vperm.xlu0 %1752, %v1359
        %v1754 = vpop.permute.xlu0 %1753
        %1757 = vset.pattern.permute.xlu0 0
        %1758 = vperm.xlu0 %1757, %v1360
        %v1759 = vpop.permute.xlu0 %1758
        %1762 = vset.pattern.permute.xlu0 0
        %1763 = vperm.xlu0 %1762, %v1361
        %v1764 = vpop.permute.xlu0 %1763
        %1767 = vset.pattern.permute.xlu0 0
        %1768 = vperm.xlu0 %1767, %v1362
        %v1769 = vpop.permute.xlu0 %1768
        %1772 = vset.pattern.permute.xlu0 0
        %1773 = vperm.xlu0 %1772, %v1363
        %v1774 = vpop.permute.xlu0 %1773
        %1777 = vset.pattern.permute.xlu0 0
        %1778 = vperm.xlu0 %1777, %v1364
        %v1779 = vpop.permute.xlu0 %1778
        %1782 = vset.pattern.permute.xlu0 0
        %1783 = vperm.xlu0 %1782, %v1365
        %v1784 = vpop.permute.xlu0 %1783
        %1787 = vset.pattern.permute.xlu0 0
        %1788 = vperm.xlu0 %1787, %v1366
        %v1789 = vpop.permute.xlu0 %1788
        %1792 = vset.pattern.permute.xlu0 0
        %1793 = vperm.xlu0 %1792, %v1367
        %v1794 = vpop.permute.xlu0 %1793
        %1797 = vset.pattern.permute.xlu0 0
        %1798 = vperm.xlu0 %1797, %v1368
        %v1799 = vpop.permute.xlu0 %1798
        %1802 = vset.pattern.permute.xlu0 0
        %1803 = vperm.xlu0 %1802, %v1369
        %v1804 = vpop.permute.xlu0 %1803
        %1807 = vset.pattern.permute.xlu0 0
        %1808 = vperm.xlu0 %1807, %v1370
        %v1809 = vpop.permute.xlu0 %1808
        %1812 = vset.pattern.permute.xlu0 0
        %1813 = vperm.xlu0 %1812, %v1371
        %v1814 = vpop.permute.xlu0 %1813
        %1817 = vset.pattern.permute.xlu0 0
        %1818 = vperm.xlu0 %1817, %v1372
        %v1819 = vpop.permute.xlu0 %1818
        %1822 = vset.pattern.permute.xlu0 0
        %1823 = vperm.xlu0 %1822, %v1373
        %v1824 = vpop.permute.xlu0 %1823
        %1827 = vset.pattern.permute.xlu0 0
        %1828 = vperm.xlu0 %1827, %v1374
        %v1829 = vpop.permute.xlu0 %1828
        %1832 = vset.pattern.permute.xlu0 0
        %1833 = vperm.xlu0 %1832, %v1375
        %v1834 = vpop.permute.xlu0 %1833
        %1837 = vset.pattern.permute.xlu0 0
        %1838 = vperm.xlu0 %1837, %v1376
        %v1839 = vpop.permute.xlu0 %1838
        %1842 = vset.pattern.permute.xlu0 0
        %1843 = vperm.xlu0 %1842, %v1377
        %v1844 = vpop.permute.xlu0 %1843
        %1847 = vset.pattern.permute.xlu0 0
        %1848 = vperm.xlu0 %1847, %v1378
        %v1849 = vpop.permute.xlu0 %1848
        %1852 = vset.pattern.permute.xlu0 0
        %1853 = vperm.xlu0 %1852, %v1379
        %v1854 = vpop.permute.xlu0 %1853
        %1857 = vset.pattern.permute.xlu0 0
        %1858 = vperm.xlu0 %1857, %v1380
        %v1859 = vpop.permute.xlu0 %1858
        %v1957 = vunpack.c.l.b16 %v1157
        %v1958 = vunpack.c.h.b16 %v1157
        %v1959 = vunpack.c.l.b16 %v1158
        %v1960 = vunpack.c.h.b16 %v1158
        %v1961 = vunpack.c.l.b16 %v1159
        %v1962 = vunpack.c.h.b16 %v1159
        %v1963 = vunpack.c.l.b16 %v1160
        %v1964 = vunpack.c.h.b16 %v1160
        %v1965 = vunpack.c.l.b16 %v1161
        %v1966 = vunpack.c.h.b16 %v1161
        %v1967 = vunpack.c.l.b16 %v1162
        %v1968 = vunpack.c.h.b16 %v1162
        %v1969 = vunpack.c.l.b16 %v1163
        %v1970 = vunpack.c.h.b16 %v1163
        %v1971 = vunpack.c.l.b16 %v1164
        %v1972 = vunpack.c.h.b16 %v1164
        %v1973 = vunpack.c.l.b16 %v1165
        %v1974 = vunpack.c.h.b16 %v1165
        %v1975 = vunpack.c.l.b16 %v1166
        %v1976 = vunpack.c.h.b16 %v1166
        %v1977 = vunpack.c.l.b16 %v1167
        %v1978 = vunpack.c.h.b16 %v1167
        %v1979 = vunpack.c.l.b16 %v1168
        %v1980 = vunpack.c.h.b16 %v1168
        %v1981 = vunpack.c.l.b16 %v1169
        %v1982 = vunpack.c.h.b16 %v1169
        %v1983 = vunpack.c.l.b16 %v1170
        %v1984 = vunpack.c.h.b16 %v1170
        %v1985 = vunpack.c.l.b16 %v1171
        %v1986 = vunpack.c.h.b16 %v1171
        %v1987 = vunpack.c.l.b16 %v1172
        %v1988 = vunpack.c.h.b16 %v1172
        %v1989 = vunpack.c.l.b16 %v1173
        %v1990 = vunpack.c.h.b16 %v1173
        %v1991 = vunpack.c.l.b16 %v1174
        %v1992 = vunpack.c.h.b16 %v1174
        %v1993 = vunpack.c.l.b16 %v1175
        %v1994 = vunpack.c.h.b16 %v1175
        %v1995 = vunpack.c.l.b16 %v1176
        %v1996 = vunpack.c.h.b16 %v1176
        %v1997 = vunpack.c.l.b16 %v1177
        %v1998 = vunpack.c.h.b16 %v1177
        %v1999 = vunpack.c.l.b16 %v1178
        %v2000 = vunpack.c.h.b16 %v1178
        %v2001 = vunpack.c.l.b16 %v1179
        %v2002 = vunpack.c.h.b16 %v1179
        %v2003 = vunpack.c.l.b16 %v1180
        %v2004 = vunpack.c.h.b16 %v1180
        %v2005 = vunpack.c.l.b16 %v1181
        %v2006 = vunpack.c.h.b16 %v1181
        %v2007 = vunpack.c.l.b16 %v1182
        %v2008 = vunpack.c.h.b16 %v1182
        %v2009 = vunpack.c.l.b16 %v1183
        %v2010 = vunpack.c.h.b16 %v1183
        %v2011 = vunpack.c.l.b16 %v1184
        %v2012 = vunpack.c.h.b16 %v1184
        %v2013 = vunpack.c.l.b16 %v1185
        %v2014 = vunpack.c.h.b16 %v1185
        %v2015 = vunpack.c.l.b16 %v1186
        %v2016 = vunpack.c.h.b16 %v1186
        %v2017 = vunpack.c.l.b16 %v1187
        %v2018 = vunpack.c.h.b16 %v1187
        %v2019 = vunpack.c.l.b16 %v1188
        %v2020 = vunpack.c.h.b16 %v1188
        %v2021 = vunpack.c.l.b16 %v1189
        %v2022 = vunpack.c.h.b16 %v1189
        %v2023 = vunpack.c.l.b16 %v1190
        %v2024 = vunpack.c.h.b16 %v1190
        %v2025 = vunpack.c.l.b16 %v1191
        %v2026 = vunpack.c.h.b16 %v1191
        %v2027 = vunpack.c.l.b16 %v1192
        %v2028 = vunpack.c.h.b16 %v1192
        %v2029 = vunpack.c.l.b16 %v1193
        %v2030 = vunpack.c.h.b16 %v1193
        %v2031 = vunpack.c.l.b16 %v1194
        %v2032 = vunpack.c.h.b16 %v1194
        %v2033 = vunpack.c.l.b16 %v1195
        %v2034 = vunpack.c.h.b16 %v1195
        %v2035 = vunpack.c.l.b16 %v1196
        %v2036 = vunpack.c.h.b16 %v1196
        %v2037 = vunpack.c.l.b16 %v1197
        %v2038 = vunpack.c.h.b16 %v1197
        %v2039 = vunpack.c.l.b16 %v1198
        %v2040 = vunpack.c.h.b16 %v1198
        %v2041 = vunpack.c.l.b16 %v1199
        %v2042 = vunpack.c.h.b16 %v1199
        %v2043 = vunpack.c.l.b16 %v1200
        %v2044 = vunpack.c.h.b16 %v1200
        %v2045 = vunpack.c.l.b16 %v1201
        %v2046 = vunpack.c.h.b16 %v1201
        %v2047 = vunpack.c.l.b16 %v1202
        %v2048 = vunpack.c.h.b16 %v1202
        %v2049 = vunpack.c.l.b16 %v1203
        %v2050 = vunpack.c.h.b16 %v1203
        %v2051 = vunpack.c.l.b16 %v1204
        %v2052 = vunpack.c.h.b16 %v1204
        %v2053 = vunpack.c.l.b16 %v1205
        %v2054 = vunpack.c.h.b16 %v1205
        %v2055 = vunpack.c.l.b16 %v1206
        %v2056 = vunpack.c.h.b16 %v1206
        %v2057 = vunpack.c.l.b16 %v1207
        %v2058 = vunpack.c.h.b16 %v1207
        %v2059 = vunpack.c.l.b16 %v1208
        %v2060 = vunpack.c.h.b16 %v1208
        %v2061 = vunpack.c.l.b16 %v1209
        %v2062 = vunpack.c.h.b16 %v1209
        %v2063 = vunpack.c.l.b16 %v1210
        %v2064 = vunpack.c.h.b16 %v1210
        %v2065 = vunpack.c.l.b16 %v1211
        %v2066 = vunpack.c.h.b16 %v1211
        %v2067 = vunpack.c.l.b16 %v1212
        %v2068 = vunpack.c.h.b16 %v1212
        %v2069 = vunpack.c.l.b16 %v1213
        %v2070 = vunpack.c.h.b16 %v1213
        %v2071 = vunpack.c.l.b16 %v1214
        %v2072 = vunpack.c.h.b16 %v1214
        %v2073 = vunpack.c.l.b16 %v1215
        %v2074 = vunpack.c.h.b16 %v1215
        %v2075 = vunpack.c.l.b16 %v1216
        %v2076 = vunpack.c.h.b16 %v1216
        %v2077 = vunpack.c.l.b16 %v1217
        %v2078 = vunpack.c.h.b16 %v1217
        %v2079 = vunpack.c.l.b16 %v1218
        %v2080 = vunpack.c.h.b16 %v1218
        %v2081 = vunpack.c.l.b16 %v1219
        %v2082 = vunpack.c.h.b16 %v1219
        %v2083 = vunpack.c.l.b16 %v1220
        %v2084 = vunpack.c.h.b16 %v1220
        %v2085 = vunpack.c.l.b16 %v1221
        %v2086 = vunpack.c.h.b16 %v1221
        %v2087 = vunpack.c.l.b16 %v1222
        %v2088 = vunpack.c.h.b16 %v1222
        %v2089 = vunpack.c.l.b16 %v1223
        %v2090 = vunpack.c.h.b16 %v1223
        %v2091 = vunpack.c.l.b16 %v1224
        %v2092 = vunpack.c.h.b16 %v1224
        %v2093 = vunpack.c.l.b16 %v1225
        %v2094 = vunpack.c.h.b16 %v1225
        %v2095 = vunpack.c.l.b16 %v1226
        %v2096 = vunpack.c.h.b16 %v1226
        %v2097 = vunpack.c.l.b16 %v1227
        %v2098 = vunpack.c.h.b16 %v1227
        %v2099 = vunpack.c.l.b16 %v1228
        %v2100 = vunpack.c.h.b16 %v1228
        %v2101 = vunpack.c.l.b16 %v1229
        %v2102 = vunpack.c.h.b16 %v1229
        %v2103 = vunpack.c.l.b16 %v1230
        %v2104 = vunpack.c.h.b16 %v1230
        %v2105 = vunpack.c.l.b16 %v1231
        %v2106 = vunpack.c.h.b16 %v1231
        %v2107 = vunpack.c.l.b16 %v1232
        %v2108 = vunpack.c.h.b16 %v1232
        %v2109 = vunpack.c.l.b16 %v1233
        %v2110 = vunpack.c.h.b16 %v1233
        %v2111 = vunpack.c.l.b16 %v1234
        %v2112 = vunpack.c.h.b16 %v1234
        %v2113 = vunpack.c.l.b16 %v1235
        %v2114 = vunpack.c.h.b16 %v1235
        %v2115 = vunpack.c.l.b16 %v1236
        %v2116 = vunpack.c.h.b16 %v1236
        %v2117 = vunpack.c.l.b16 %v1237
        %v2118 = vunpack.c.h.b16 %v1237
        %v2119 = vunpack.c.l.b16 %v1238
        %v2120 = vunpack.c.h.b16 %v1238
        %v2121 = vunpack.c.l.b16 %v1239
        %v2122 = vunpack.c.h.b16 %v1239
        %v2123 = vunpack.c.l.b16 %v1240
        %v2124 = vunpack.c.h.b16 %v1240
        %v2125 = vunpack.c.l.b16 %v1241
        %v2126 = vunpack.c.h.b16 %v1241
        %v2127 = vunpack.c.l.b16 %v1242
        %v2128 = vunpack.c.h.b16 %v1242
        %v2129 = vunpack.c.l.b16 %v1243
        %v2130 = vunpack.c.h.b16 %v1243
        %v2131 = vunpack.c.l.b16 %v1244
        %v2132 = vunpack.c.h.b16 %v1244
        %v2133 = vunpack.c.l.b16 %v1245
        %v2134 = vunpack.c.h.b16 %v1245
        %v2135 = vunpack.c.l.b16 %v1246
        %v2136 = vunpack.c.h.b16 %v1246
        %v2137 = vunpack.c.l.b16 %v1247
        %v2138 = vunpack.c.h.b16 %v1247
        %v2139 = vunpack.c.l.b16 %v1248
        %v2140 = vunpack.c.h.b16 %v1248
        %v2141 = vunpack.c.l.b16 %v1249
        %v2142 = vunpack.c.h.b16 %v1249
        %v2143 = vunpack.c.l.b16 %v1250
        %v2144 = vunpack.c.h.b16 %v1250
        %v2145 = vunpack.c.l.b16 %v1251
        %v2146 = vunpack.c.h.b16 %v1251
        %v2147 = vunpack.c.l.b16 %v1252
        %v2148 = vunpack.c.h.b16 %v1252
        %v2149 = vpack.c.b16 %v1959, %v1957
        %v2150 = vpack.c.b16 %v1960, %v1958
        %v2151 = vpack.c.b16 %v1963, %v1961
        %v2152 = vpack.c.b16 %v1964, %v1962
        %v2153 = vpack.c.b16 %v1967, %v1965
        %v2154 = vpack.c.b16 %v1968, %v1966
        %v2155 = vpack.c.b16 %v1971, %v1969
        %v2156 = vpack.c.b16 %v1972, %v1970
        %v2157 = vpack.c.b16 %v1975, %v1973
        %v2158 = vpack.c.b16 %v1976, %v1974
        %v2159 = vpack.c.b16 %v1979, %v1977
        %v2160 = vpack.c.b16 %v1980, %v1978
        %v2161 = vpack.c.b16 %v1983, %v1981
        %v2162 = vpack.c.b16 %v1984, %v1982
        %v2163 = vpack.c.b16 %v1987, %v1985
        %v2164 = vpack.c.b16 %v1988, %v1986
        %v2165 = vpack.c.b16 %v1991, %v1989
        %v2166 = vpack.c.b16 %v1992, %v1990
        %v2167 = vpack.c.b16 %v1995, %v1993
        %v2168 = vpack.c.b16 %v1996, %v1994
        %v2169 = vpack.c.b16 %v1999, %v1997
        %v2170 = vpack.c.b16 %v2000, %v1998
        %v2171 = vpack.c.b16 %v2003, %v2001
        %v2172 = vpack.c.b16 %v2004, %v2002
        %v2173 = vpack.c.b16 %v2007, %v2005
        %v2174 = vpack.c.b16 %v2008, %v2006
        %v2175 = vpack.c.b16 %v2011, %v2009
        %v2176 = vpack.c.b16 %v2012, %v2010
        %v2177 = vpack.c.b16 %v2015, %v2013
        %v2178 = vpack.c.b16 %v2016, %v2014
        %v2179 = vpack.c.b16 %v2019, %v2017
        %v2180 = vpack.c.b16 %v2020, %v2018
        %v2181 = vpack.c.b16 %v2023, %v2021
        %v2182 = vpack.c.b16 %v2024, %v2022
        %v2183 = vpack.c.b16 %v2027, %v2025
        %v2184 = vpack.c.b16 %v2028, %v2026
        %v2185 = vpack.c.b16 %v2031, %v2029
        %v2186 = vpack.c.b16 %v2032, %v2030
        %v2187 = vpack.c.b16 %v2035, %v2033
        %v2188 = vpack.c.b16 %v2036, %v2034
        %v2189 = vpack.c.b16 %v2039, %v2037
        %v2190 = vpack.c.b16 %v2040, %v2038
        %v2191 = vpack.c.b16 %v2043, %v2041
        %v2192 = vpack.c.b16 %v2044, %v2042
        %v2193 = vpack.c.b16 %v2047, %v2045
        %v2194 = vpack.c.b16 %v2048, %v2046
        %v2195 = vpack.c.b16 %v2051, %v2049
        %v2196 = vpack.c.b16 %v2052, %v2050
        %v2197 = vpack.c.b16 %v2055, %v2053
        %v2198 = vpack.c.b16 %v2056, %v2054
        %v2199 = vpack.c.b16 %v2059, %v2057
        %v2200 = vpack.c.b16 %v2060, %v2058
        %v2201 = vpack.c.b16 %v2063, %v2061
        %v2202 = vpack.c.b16 %v2064, %v2062
        %v2203 = vpack.c.b16 %v2067, %v2065
        %v2204 = vpack.c.b16 %v2068, %v2066
        %v2205 = vpack.c.b16 %v2071, %v2069
        %v2206 = vpack.c.b16 %v2072, %v2070
        %v2207 = vpack.c.b16 %v2075, %v2073
        %v2208 = vpack.c.b16 %v2076, %v2074
        %v2209 = vpack.c.b16 %v2079, %v2077
        %v2210 = vpack.c.b16 %v2080, %v2078
        %v2211 = vpack.c.b16 %v2083, %v2081
        %v2212 = vpack.c.b16 %v2084, %v2082
        %v2213 = vpack.c.b16 %v2087, %v2085
        %v2214 = vpack.c.b16 %v2088, %v2086
        %v2215 = vpack.c.b16 %v2091, %v2089
        %v2216 = vpack.c.b16 %v2092, %v2090
        %v2217 = vpack.c.b16 %v2095, %v2093
        %v2218 = vpack.c.b16 %v2096, %v2094
        %v2219 = vpack.c.b16 %v2099, %v2097
        %v2220 = vpack.c.b16 %v2100, %v2098
        %v2221 = vpack.c.b16 %v2103, %v2101
        %v2222 = vpack.c.b16 %v2104, %v2102
        %v2223 = vpack.c.b16 %v2107, %v2105
        %v2224 = vpack.c.b16 %v2108, %v2106
        %v2225 = vpack.c.b16 %v2111, %v2109
        %v2226 = vpack.c.b16 %v2112, %v2110
        %v2227 = vpack.c.b16 %v2115, %v2113
        %v2228 = vpack.c.b16 %v2116, %v2114
        %v2229 = vpack.c.b16 %v2119, %v2117
        %v2230 = vpack.c.b16 %v2120, %v2118
        %v2231 = vpack.c.b16 %v2123, %v2121
        %v2232 = vpack.c.b16 %v2124, %v2122
        %v2233 = vpack.c.b16 %v2127, %v2125
        %v2234 = vpack.c.b16 %v2128, %v2126
        %v2235 = vpack.c.b16 %v2131, %v2129
        %v2236 = vpack.c.b16 %v2132, %v2130
        %v2237 = vpack.c.b16 %v2135, %v2133
        %v2238 = vpack.c.b16 %v2136, %v2134
        %v2239 = vpack.c.b16 %v2139, %v2137
        %v2240 = vpack.c.b16 %v2140, %v2138
        %v2241 = vpack.c.b16 %v2143, %v2141
        %v2242 = vpack.c.b16 %v2144, %v2142
        %v2243 = vpack.c.b16 %v2147, %v2145
        %v2244 = vpack.c.b16 %v2148, %v2146
        %2341 = vmatprep.subr.bf16.mxu0 %v1254
        %2342 = vmatpush1.bf16.msra.mxu0 %v1253
        %2343 = vmatprep.subr.bf16.mxu0 %v1256
        %2344 = vmatpush1.bf16.msra.mxu0 %v1255
        %2345 = vmatprep.subr.bf16.mxu0 %v1258
        %2346 = vmatpush1.bf16.msra.mxu0 %v1257
        %2347 = vmatprep.subr.bf16.mxu0 %v1260
        %2348 = vmatpush1.bf16.msra.mxu0 %v1259
        %2349 = vmatprep.subr.bf16.mxu0 %v1262
        %2350 = vmatpush1.bf16.msra.mxu0 %v1261
        %2351 = vmatprep.subr.bf16.mxu0 %v1264
        %2352 = vmatpush1.bf16.msra.mxu0 %v1263
        %2353 = vmatprep.subr.bf16.mxu0 %v1266
        %2354 = vmatpush1.bf16.msra.mxu0 %v1265
        %2355 = vmatprep.subr.bf16.mxu0 %v1268
        %2356 = vmatpush1.bf16.msra.mxu0 %v1267
        %2357 = vmatprep.subr.bf16.mxu0 %v1270
        %2358 = vmatpush1.bf16.msra.mxu0 %v1269
        %2359 = vmatprep.subr.bf16.mxu0 %v1272
        %2360 = vmatpush1.bf16.msra.mxu0 %v1271
        %2361 = vmatprep.subr.bf16.mxu0 %v1274
        %2362 = vmatpush1.bf16.msra.mxu0 %v1273
        %2363 = vmatprep.subr.bf16.mxu0 %v1276
        %2364 = vmatpush1.bf16.msra.mxu0 %v1275
        %2365 = vmatprep.subr.bf16.mxu0 %v1278
        %2366 = vmatpush1.bf16.msra.mxu0 %v1277
        %2367 = vmatprep.subr.bf16.mxu0 %v1280
        %2368 = vmatpush1.bf16.msra.mxu0 %v1279
        %2369 = vmatprep.subr.bf16.mxu0 %v1282
        %2370 = vmatpush1.bf16.msra.mxu0 %v1281
        %2371 = vmatprep.subr.bf16.mxu0 %v1284
        %2372 = vmatpush1.bf16.msra.mxu0 %v1283
        %2373 = vmatprep.mubr.bf16.mxu0 %v2150
        %2374 = vmatmul.mubr.bf16.gmra.mrb[0].mxu0 %v2149
        %v2375 = vpop.f32.mrb[0].mxu0
        %v2376 = vadd.f32 %v1384, %v2375
        %v2377 = vpop.f32.mrb[0].mxu0
        %v2378 = vadd.f32 %v1384, %v2377
        %v2379 = vpop.f32.mrb[0].mxu0
        %v2380 = vadd.f32 %v1389, %v2379
        %v2381 = vpop.f32.mrb[0].mxu0
        %v2382 = vadd.f32 %v1389, %v2381
        %2383 = vmatprep.mubr.bf16.mxu0 %v2152
        %2384 = vmatmul.mubr.bf16.gmra.mrb[0].mxu0 %v2151
        %v2385 = vpop.f32.mrb[0].mxu0
        %v2386 = vadd.f32 %v1394, %v2385
        %v2387 = vpop.f32.mrb[0].mxu0
        %v2388 = vadd.f32 %v1394, %v2387
        %v2389 = vpop.f32.mrb[0].mxu0
        %v2390 = vadd.f32 %v1399, %v2389
        %v2391 = vpop.f32.mrb[0].mxu0
        %v2392 = vadd.f32 %v1399, %v2391
        %2393 = vmatprep.mubr.bf16.mxu0 %v2154
        %2394 = vmatmul.mubr.bf16.gmra.mrb[0].mxu0 %v2153
        %v2395 = vpop.f32.mrb[0].mxu0
        %v2396 = vadd.f32 %v1404, %v2395
        %v2397 = vpop.f32.mrb[0].mxu0
        %v2398 = vadd.f32 %v1404, %v2397
        %v2399 = vpop.f32.mrb[0].mxu0
        %v2400 = vadd.f32 %v1409, %v2399
        %v2401 = vpop.f32.mrb[0].mxu0
        %v2402 = vadd.f32 %v1409, %v2401
        %2403 = vmatprep.mubr.bf16.mxu0 %v2156
        %2404 = vmatmul.mubr.bf16.gmra.mrb[0].mxu0 %v2155
        %v2405 = vpop.f32.mrb[0].mxu0
        %v2406 = vadd.f32 %v1414, %v2405
        %v2407 = vpop.f32.mrb[0].mxu0
        %v2408 = vadd.f32 %v1414, %v2407
        %v2409 = vpop.f32.mrb[0].mxu0
        %v2410 = vadd.f32 %v1419, %v2409
        %v2411 = vpop.f32.mrb[0].mxu0
        %v2412 = vadd.f32 %v1419, %v2411
        %2413 = vmatprep.mubr.bf16.mxu0 %v2158
        %2414 = vmatmul.mubr.bf16.gmra.mrb[0].mxu0 %v2157
        %v2415 = vpop.f32.mrb[0].mxu0
        %v2416 = vadd.f32 %v1424, %v2415
        %v2417 = vpop.f32.mrb[0].mxu0
        %v2418 = vadd.f32 %v1424, %v2417
        %v2419 = vpop.f32.mrb[0].mxu0
        %v2420 = vadd.f32 %v1429, %v2419
        %v2421 = vpop.f32.mrb[0].mxu0
        %v2422 = vadd.f32 %v1429, %v2421
        %2423 = vmatprep.mubr.bf16.mxu0 %v2160
        %2424 = vmatmul.mubr.bf16.gmra.mrb[0].mxu0 %v2159
        %v2425 = vpop.f32.mrb[0].mxu0
        %v2426 = vadd.f32 %v1434, %v2425
        %v2427 = vpop.f32.mrb[0].mxu0
        %v2428 = vadd.f32 %v1434, %v2427
        %v2429 = vpop.f32.mrb[0].mxu0
        %v2430 = vadd.f32 %v1439, %v2429
        %v2431 = vpop.f32.mrb[0].mxu0
        %v2432 = vadd.f32 %v1439, %v2431
        %2433 = vmatprep.mubr.bf16.mxu0 %v2162
        %2434 = vmatmul.mubr.bf16.gmra.mrb[0].mxu0 %v2161
        %v2435 = vpop.f32.mrb[0].mxu0
        %v2436 = vadd.f32 %v1444, %v2435
        %v2437 = vpop.f32.mrb[0].mxu0
        %v2438 = vadd.f32 %v1444, %v2437
        %v2439 = vpop.f32.mrb[0].mxu0
        %v2440 = vadd.f32 %v1449, %v2439
        %v2441 = vpop.f32.mrb[0].mxu0
        %v2442 = vadd.f32 %v1449, %v2441
        %2443 = vmatprep.mubr.bf16.mxu0 %v2164
        %2444 = vmatmul.mubr.bf16.gmra.mrb[0].mxu0 %v2163
        %v2445 = vpop.f32.mrb[0].mxu0
        %v2446 = vadd.f32 %v1454, %v2445
        %v2447 = vpop.f32.mrb[0].mxu0
        %v2448 = vadd.f32 %v1454, %v2447
        %v2449 = vpop.f32.mrb[0].mxu0
        %v2450 = vadd.f32 %v1459, %v2449
        %v2451 = vpop.f32.mrb[0].mxu0
        %v2452 = vadd.f32 %v1459, %v2451
        %2453 = vmatprep.mubr.bf16.mxu0 %v2166
        %2454 = vmatmul.mubr.bf16.gmra.mrb[0].mxu0 %v2165
        %v2455 = vpop.f32.mrb[0].mxu0
        %v2456 = vadd.f32 %v1464, %v2455
        %v2457 = vpop.f32.mrb[0].mxu0
        %v2458 = vadd.f32 %v1464, %v2457
        %v2459 = vpop.f32.mrb[0].mxu0
        %v2460 = vadd.f32 %v1469, %v2459
        %v2461 = vpop.f32.mrb[0].mxu0
        %v2462 = vadd.f32 %v1469, %v2461
        %2463 = vmatprep.mubr.bf16.mxu0 %v2168
        %2464 = vmatmul.mubr.bf16.gmra.mrb[0].mxu0 %v2167
        %v2465 = vpop.f32.mrb[0].mxu0
        %v2466 = vadd.f32 %v1474, %v2465
        %v2467 = vpop.f32.mrb[0].mxu0
        %v2468 = vadd.f32 %v1474, %v2467
        %v2469 = vpop.f32.mrb[0].mxu0
        %v2470 = vadd.f32 %v1479, %v2469
        %v2471 = vpop.f32.mrb[0].mxu0
        %v2472 = vadd.f32 %v1479, %v2471
        %2473 = vmatprep.mubr.bf16.mxu0 %v2170
        %2474 = vmatmul.mubr.bf16.gmra.mrb[0].mxu0 %v2169
        %v2475 = vpop.f32.mrb[0].mxu0
        %v2476 = vadd.f32 %v1484, %v2475
        %v2477 = vpop.f32.mrb[0].mxu0
        %v2478 = vadd.f32 %v1484, %v2477
        %v2479 = vpop.f32.mrb[0].mxu0
        %v2480 = vadd.f32 %v1489, %v2479
        %v2481 = vpop.f32.mrb[0].mxu0
        %v2482 = vadd.f32 %v1489, %v2481
        %2483 = vmatprep.mubr.bf16.mxu0 %v2172
        %2484 = vmatmul.mubr.bf16.gmra.mrb[0].mxu0 %v2171
        %v2485 = vpop.f32.mrb[0].mxu0
        %v2486 = vadd.f32 %v1494, %v2485
        %v2487 = vpop.f32.mrb[0].mxu0
        %v2488 = vadd.f32 %v1494, %v2487
        %v2489 = vpop.f32.mrb[0].mxu0
        %v2490 = vadd.f32 %v1499, %v2489
        %v2491 = vpop.f32.mrb[0].mxu0
        %v2492 = vadd.f32 %v1499, %v2491
        %2493 = vmatprep.mubr.bf16.mxu0 %v2174
        %2494 = vmatmul.mubr.bf16.gmra.mrb[0].mxu0 %v2173
        %v2495 = vpop.f32.mrb[0].mxu0
        %v2496 = vadd.f32 %v1504, %v2495
        %v2497 = vpop.f32.mrb[0].mxu0
        %v2498 = vadd.f32 %v1504, %v2497
        %v2499 = vpop.f32.mrb[0].mxu0
        %v2500 = vadd.f32 %v1509, %v2499
        %v2501 = vpop.f32.mrb[0].mxu0
        %v2502 = vadd.f32 %v1509, %v2501
        %2503 = vmatprep.mubr.bf16.mxu0 %v2176
        %2504 = vmatmul.mubr.bf16.gmra.mrb[0].mxu0 %v2175
        %v2505 = vpop.f32.mrb[0].mxu0
        %v2506 = vadd.f32 %v1514, %v2505
        %v2507 = vpop.f32.mrb[0].mxu0
        %v2508 = vadd.f32 %v1514, %v2507
        %v2509 = vpop.f32.mrb[0].mxu0
        %v2510 = vadd.f32 %v1519, %v2509
        %v2511 = vpop.f32.mrb[0].mxu0
        %v2512 = vadd.f32 %v1519, %v2511
        %2513 = vmatprep.mubr.bf16.mxu0 %v2178
        %2514 = vmatmul.mubr.bf16.gmra.mrb[0].mxu0 %v2177
        %v2515 = vpop.f32.mrb[0].mxu0
        %v2516 = vadd.f32 %v1524, %v2515
        %v2517 = vpop.f32.mrb[0].mxu0
        %v2518 = vadd.f32 %v1524, %v2517
        %v2519 = vpop.f32.mrb[0].mxu0
        %v2520 = vadd.f32 %v1529, %v2519
        %v2521 = vpop.f32.mrb[0].mxu0
        %v2522 = vadd.f32 %v1529, %v2521
        %2523 = vmatprep.mubr.bf16.mxu0 %v2180
        %2524 = vmatmul.mubr.bf16.gmra.mrb[0].mxu0 %v2179
        %v2525 = vpop.f32.mrb[0].mxu0
        %v2526 = vadd.f32 %v1534, %v2525
        %v2527 = vpop.f32.mrb[0].mxu0
        %v2528 = vadd.f32 %v1534, %v2527
        %v2529 = vpop.f32.mrb[0].mxu0
        %v2530 = vadd.f32 %v1539, %v2529
        %v2531 = vpop.f32.mrb[0].mxu0
        %v2532 = vadd.f32 %v1539, %v2531
        %2533 = vmatprep.mubr.bf16.mxu0 %v2182
        %2534 = vmatmul.mubr.bf16.gmra.mrb[0].mxu0 %v2181
        %v2535 = vpop.f32.mrb[0].mxu0
        %v2536 = vadd.f32 %v1544, %v2535
        %v2537 = vpop.f32.mrb[0].mxu0
        %v2538 = vadd.f32 %v1544, %v2537
        %v2539 = vpop.f32.mrb[0].mxu0
        %v2540 = vadd.f32 %v1549, %v2539
        %v2541 = vpop.f32.mrb[0].mxu0
        %v2542 = vadd.f32 %v1549, %v2541
        %2543 = vmatprep.mubr.bf16.mxu0 %v2184
        %2544 = vmatmul.mubr.bf16.gmra.mrb[0].mxu0 %v2183
        %v2545 = vpop.f32.mrb[0].mxu0
        %v2546 = vadd.f32 %v1554, %v2545
        %v2547 = vpop.f32.mrb[0].mxu0
        %v2548 = vadd.f32 %v1554, %v2547
        %v2549 = vpop.f32.mrb[0].mxu0
        %v2550 = vadd.f32 %v1559, %v2549
        %v2551 = vpop.f32.mrb[0].mxu0
        %v2552 = vadd.f32 %v1559, %v2551
        %2553 = vmatprep.mubr.bf16.mxu0 %v2186
        %2554 = vmatmul.mubr.bf16.gmra.mrb[0].mxu0 %v2185
        %v2555 = vpop.f32.mrb[0].mxu0
        %v2556 = vadd.f32 %v1564, %v2555
        %v2557 = vpop.f32.mrb[0].mxu0
        %v2558 = vadd.f32 %v1564, %v2557
        %v2559 = vpop.f32.mrb[0].mxu0
        %v2560 = vadd.f32 %v1569, %v2559
        %v2561 = vpop.f32.mrb[0].mxu0
        %v2562 = vadd.f32 %v1569, %v2561
        %2563 = vmatprep.mubr.bf16.mxu0 %v2188
        %2564 = vmatmul.mubr.bf16.gmra.mrb[0].mxu0 %v2187
        %v2565 = vpop.f32.mrb[0].mxu0
        %v2566 = vadd.f32 %v1574, %v2565
        %v2567 = vpop.f32.mrb[0].mxu0
        %v2568 = vadd.f32 %v1574, %v2567
        %v2569 = vpop.f32.mrb[0].mxu0
        %v2570 = vadd.f32 %v1579, %v2569
        %v2571 = vpop.f32.mrb[0].mxu0
        %v2572 = vadd.f32 %v1579, %v2571
        %2573 = vmatprep.mubr.bf16.mxu0 %v2190
        %2574 = vmatmul.mubr.bf16.gmra.mrb[0].mxu0 %v2189
        %v2575 = vpop.f32.mrb[0].mxu0
        %v2576 = vadd.f32 %v1584, %v2575
        %v2577 = vpop.f32.mrb[0].mxu0
        %v2578 = vadd.f32 %v1584, %v2577
        %v2579 = vpop.f32.mrb[0].mxu0
        %v2580 = vadd.f32 %v1589, %v2579
        %v2581 = vpop.f32.mrb[0].mxu0
        %v2582 = vadd.f32 %v1589, %v2581
        %2583 = vmatprep.mubr.bf16.mxu0 %v2192
        %2584 = vmatmul.mubr.bf16.gmra.mrb[0].mxu0 %v2191
        %v2585 = vpop.f32.mrb[0].mxu0
        %v2586 = vadd.f32 %v1594, %v2585
        %v2587 = vpop.f32.mrb[0].mxu0
        %v2588 = vadd.f32 %v1594, %v2587
        %v2589 = vpop.f32.mrb[0].mxu0
        %v2590 = vadd.f32 %v1599, %v2589
        %v2591 = vpop.f32.mrb[0].mxu0
        %v2592 = vadd.f32 %v1599, %v2591
        %2593 = vmatprep.mubr.bf16.mxu0 %v2194
        %2594 = vmatmul.mubr.bf16.gmra.mrb[0].mxu0 %v2193
        %v2595 = vpop.f32.mrb[0].mxu0
        %v2596 = vadd.f32 %v1604, %v2595
        %v2597 = vpop.f32.mrb[0].mxu0
        %v2598 = vadd.f32 %v1604, %v2597
        %v2599 = vpop.f32.mrb[0].mxu0
        %v2600 = vadd.f32 %v1609, %v2599
        %v2601 = vpop.f32.mrb[0].mxu0
        %v2602 = vadd.f32 %v1609, %v2601
        %2603 = vmatprep.mubr.bf16.mxu0 %v2196
        %2604 = vmatmul.mubr.bf16.gmra.mrb[0].mxu0 %v2195
        %v2605 = vpop.f32.mrb[0].mxu0
        %v2606 = vadd.f32 %v1614, %v2605
        %v2607 = vpop.f32.mrb[0].mxu0
        %v2608 = vadd.f32 %v1614, %v2607
        %v2609 = vpop.f32.mrb[0].mxu0
        %v2610 = vadd.f32 %v1619, %v2609
        %v2611 = vpop.f32.mrb[0].mxu0
        %v2612 = vadd.f32 %v1619, %v2611
        %2613 = vmatprep.mubr.bf16.mxu0 %v2198
        %2614 = vmatmul.mubr.bf16.gmra.mrb[0].mxu0 %v2197
        %v2615 = vpop.f32.mrb[0].mxu0
        %v2616 = vadd.f32 %v1624, %v2615
        %v2617 = vpop.f32.mrb[0].mxu0
        %v2618 = vadd.f32 %v1624, %v2617
        %v2619 = vpop.f32.mrb[0].mxu0
        %v2620 = vadd.f32 %v1629, %v2619
        %v2621 = vpop.f32.mrb[0].mxu0
        %v2622 = vadd.f32 %v1629, %v2621
        %2623 = vmatprep.mubr.bf16.mxu0 %v2200
        %2624 = vmatmul.mubr.bf16.gmra.mrb[0].mxu0 %v2199
        %v2625 = vpop.f32.mrb[0].mxu0
        %v2626 = vadd.f32 %v1634, %v2625
        %v2627 = vpop.f32.mrb[0].mxu0
        %v2628 = vadd.f32 %v1634, %v2627
        %v2629 = vpop.f32.mrb[0].mxu0
        %v2630 = vadd.f32 %v1639, %v2629
        %v2631 = vpop.f32.mrb[0].mxu0
        %v2632 = vadd.f32 %v1639, %v2631
        %2633 = vmatprep.mubr.bf16.mxu0 %v2202
        %2634 = vmatmul.mubr.bf16.gmra.mrb[0].mxu0 %v2201
        %v2635 = vpop.f32.mrb[0].mxu0
        %v2636 = vadd.f32 %v1644, %v2635
        %v2637 = vpop.f32.mrb[0].mxu0
        %v2638 = vadd.f32 %v1644, %v2637
        %v2639 = vpop.f32.mrb[0].mxu0
        %v2640 = vadd.f32 %v1649, %v2639
        %v2641 = vpop.f32.mrb[0].mxu0
        %v2642 = vadd.f32 %v1649, %v2641
        %2643 = vmatprep.mubr.bf16.mxu0 %v2204
        %2644 = vmatmul.mubr.bf16.gmra.mrb[0].mxu0 %v2203
        %v2645 = vpop.f32.mrb[0].mxu0
        %v2646 = vadd.f32 %v1654, %v2645
        %v2647 = vpop.f32.mrb[0].mxu0
        %v2648 = vadd.f32 %v1654, %v2647
        %v2649 = vpop.f32.mrb[0].mxu0
        %v2650 = vadd.f32 %v1659, %v2649
        %v2651 = vpop.f32.mrb[0].mxu0
        %v2652 = vadd.f32 %v1659, %v2651
        %2653 = vmatprep.mubr.bf16.mxu0 %v2206
        %2654 = vmatmul.mubr.bf16.gmra.mrb[0].mxu0 %v2205
        %v2655 = vpop.f32.mrb[0].mxu0
        %v2656 = vadd.f32 %v1664, %v2655
        %v2657 = vpop.f32.mrb[0].mxu0
        %v2658 = vadd.f32 %v1664, %v2657
        %v2659 = vpop.f32.mrb[0].mxu0
        %v2660 = vadd.f32 %v1669, %v2659
        %v2661 = vpop.f32.mrb[0].mxu0
        %v2662 = vadd.f32 %v1669, %v2661
        %2663 = vmatprep.mubr.bf16.mxu0 %v2208
        %2664 = vmatmul.mubr.bf16.gmra.mrb[0].mxu0 %v2207
        %v2665 = vpop.f32.mrb[0].mxu0
        %v2666 = vadd.f32 %v1674, %v2665
        %v2667 = vpop.f32.mrb[0].mxu0
        %v2668 = vadd.f32 %v1674, %v2667
        %v2669 = vpop.f32.mrb[0].mxu0
        %v2670 = vadd.f32 %v1679, %v2669
        %v2671 = vpop.f32.mrb[0].mxu0
        %v2672 = vadd.f32 %v1679, %v2671
        %2673 = vmatprep.mubr.bf16.mxu0 %v2210
        %2674 = vmatmul.mubr.bf16.gmra.mrb[0].mxu0 %v2209
        %v2675 = vpop.f32.mrb[0].mxu0
        %v2676 = vadd.f32 %v1684, %v2675
        %v2677 = vpop.f32.mrb[0].mxu0
        %v2678 = vadd.f32 %v1684, %v2677
        %v2679 = vpop.f32.mrb[0].mxu0
        %v2680 = vadd.f32 %v1689, %v2679
        %v2681 = vpop.f32.mrb[0].mxu0
        %v2682 = vadd.f32 %v1689, %v2681
        %2683 = vmatprep.mubr.bf16.mxu0 %v2212
        %2684 = vmatmul.mubr.bf16.gmra.mrb[0].mxu0 %v2211
        %v2685 = vpop.f32.mrb[0].mxu0
        %v2686 = vadd.f32 %v1694, %v2685
        %v2687 = vpop.f32.mrb[0].mxu0
        %v2688 = vadd.f32 %v1694, %v2687
        %v2689 = vpop.f32.mrb[0].mxu0
        %v2690 = vadd.f32 %v1699, %v2689
        %v2691 = vpop.f32.mrb[0].mxu0
        %v2692 = vadd.f32 %v1699, %v2691
        %2693 = vmatprep.mubr.bf16.mxu0 %v2214
        %2694 = vmatmul.mubr.bf16.gmra.mrb[0].mxu0 %v2213
        %v2695 = vpop.f32.mrb[0].mxu0
        %v2696 = vadd.f32 %v1704, %v2695
        %v2697 = vpop.f32.mrb[0].mxu0
        %v2698 = vadd.f32 %v1704, %v2697
        %v2699 = vpop.f32.mrb[0].mxu0
        %v2700 = vadd.f32 %v1709, %v2699
        %v2701 = vpop.f32.mrb[0].mxu0
        %v2702 = vadd.f32 %v1709, %v2701
        %2703 = vmatprep.mubr.bf16.mxu0 %v2216
        %2704 = vmatmul.mubr.bf16.gmra.mrb[0].mxu0 %v2215
        %v2705 = vpop.f32.mrb[0].mxu0
        %v2706 = vadd.f32 %v1714, %v2705
        %v2707 = vpop.f32.mrb[0].mxu0
        %v2708 = vadd.f32 %v1714, %v2707
        %v2709 = vpop.f32.mrb[0].mxu0
        %v2710 = vadd.f32 %v1719, %v2709
        %v2711 = vpop.f32.mrb[0].mxu0
        %v2712 = vadd.f32 %v1719, %v2711
        %2713 = vmatprep.mubr.bf16.mxu0 %v2218
        %2714 = vmatmul.mubr.bf16.gmra.mrb[0].mxu0 %v2217
        %v2715 = vpop.f32.mrb[0].mxu0
        %v2716 = vadd.f32 %v1724, %v2715
        %v2717 = vpop.f32.mrb[0].mxu0
        %v2718 = vadd.f32 %v1724, %v2717
        %v2719 = vpop.f32.mrb[0].mxu0
        %v2720 = vadd.f32 %v1729, %v2719
        %v2721 = vpop.f32.mrb[0].mxu0
        %v2722 = vadd.f32 %v1729, %v2721
        %2723 = vmatprep.mubr.bf16.mxu0 %v2220
        %2724 = vmatmul.mubr.bf16.gmra.mrb[0].mxu0 %v2219
        %v2725 = vpop.f32.mrb[0].mxu0
        %v2726 = vadd.f32 %v1734, %v2725
        %v2727 = vpop.f32.mrb[0].mxu0
        %v2728 = vadd.f32 %v1734, %v2727
        %v2729 = vpop.f32.mrb[0].mxu0
        %v2730 = vadd.f32 %v1739, %v2729
        %v2731 = vpop.f32.mrb[0].mxu0
        %v2732 = vadd.f32 %v1739, %v2731
        %2733 = vmatprep.mubr.bf16.mxu0 %v2222
        %2734 = vmatmul.mubr.bf16.gmra.mrb[0].mxu0 %v2221
        %v2735 = vpop.f32.mrb[0].mxu0
        %v2736 = vadd.f32 %v1744, %v2735
        %v2737 = vpop.f32.mrb[0].mxu0
        %v2738 = vadd.f32 %v1744, %v2737
        %v2739 = vpop.f32.mrb[0].mxu0
        %v2740 = vadd.f32 %v1749, %v2739
        %v2741 = vpop.f32.mrb[0].mxu0
        %v2742 = vadd.f32 %v1749, %v2741
        %2743 = vmatprep.mubr.bf16.mxu0 %v2224
        %2744 = vmatmul.mubr.bf16.gmra.mrb[0].mxu0 %v2223
        %v2745 = vpop.f32.mrb[0].mxu0
        %v2746 = vadd.f32 %v1754, %v2745
        %v2747 = vpop.f32.mrb[0].mxu0
        %v2748 = vadd.f32 %v1754, %v2747
        %v2749 = vpop.f32.mrb[0].mxu0
        %v2750 = vadd.f32 %v1759, %v2749
        %v2751 = vpop.f32.mrb[0].mxu0
        %v2752 = vadd.f32 %v1759, %v2751
        %2753 = vmatprep.mubr.bf16.mxu0 %v2226
        %2754 = vmatmul.mubr.bf16.gmra.mrb[0].mxu0 %v2225
        %v2755 = vpop.f32.mrb[0].mxu0
        %v2756 = vadd.f32 %v1764, %v2755
        %v2757 = vpop.f32.mrb[0].mxu0
        %v2758 = vadd.f32 %v1764, %v2757
        %v2759 = vpop.f32.mrb[0].mxu0
        %v2760 = vadd.f32 %v1769, %v2759
        %v2761 = vpop.f32.mrb[0].mxu0
        %v2762 = vadd.f32 %v1769, %v2761
        %2763 = vmatprep.mubr.bf16.mxu0 %v2228
        %2764 = vmatmul.mubr.bf16.gmra.mrb[0].mxu0 %v2227
        %v2765 = vpop.f32.mrb[0].mxu0
        %v2766 = vadd.f32 %v1774, %v2765
        %v2767 = vpop.f32.mrb[0].mxu0
        %v2768 = vadd.f32 %v1774, %v2767
        %v2769 = vpop.f32.mrb[0].mxu0
        %v2770 = vadd.f32 %v1779, %v2769
        %v2771 = vpop.f32.mrb[0].mxu0
        %v2772 = vadd.f32 %v1779, %v2771
        %2773 = vmatprep.mubr.bf16.mxu0 %v2230
        %2774 = vmatmul.mubr.bf16.gmra.mrb[0].mxu0 %v2229
        %v2775 = vpop.f32.mrb[0].mxu0
        %v2776 = vadd.f32 %v1784, %v2775
        %v2777 = vpop.f32.mrb[0].mxu0
        %v2778 = vadd.f32 %v1784, %v2777
        %v2779 = vpop.f32.mrb[0].mxu0
        %v2780 = vadd.f32 %v1789, %v2779
        %v2781 = vpop.f32.mrb[0].mxu0
        %v2782 = vadd.f32 %v1789, %v2781
        %2783 = vmatprep.mubr.bf16.mxu0 %v2232
        %2784 = vmatmul.mubr.bf16.gmra.mrb[0].mxu0 %v2231
        %v2785 = vpop.f32.mrb[0].mxu0
        %v2786 = vadd.f32 %v1794, %v2785
        %v2787 = vpop.f32.mrb[0].mxu0
        %v2788 = vadd.f32 %v1794, %v2787
        %v2789 = vpop.f32.mrb[0].mxu0
        %v2790 = vadd.f32 %v1799, %v2789
        %v2791 = vpop.f32.mrb[0].mxu0
        %v2792 = vadd.f32 %v1799, %v2791
        %2793 = vmatprep.mubr.bf16.mxu0 %v2234
        %2794 = vmatmul.mubr.bf16.gmra.mrb[0].mxu0 %v2233
        %v2795 = vpop.f32.mrb[0].mxu0
        %v2796 = vadd.f32 %v1804, %v2795
        %v2797 = vpop.f32.mrb[0].mxu0
        %v2798 = vadd.f32 %v1804, %v2797
        %v2799 = vpop.f32.mrb[0].mxu0
        %v2800 = vadd.f32 %v1809, %v2799
        %v2801 = vpop.f32.mrb[0].mxu0
        %v2802 = vadd.f32 %v1809, %v2801
        %2803 = vmatprep.mubr.bf16.mxu0 %v2236
        %2804 = vmatmul.mubr.bf16.gmra.mrb[0].mxu0 %v2235
        %v2805 = vpop.f32.mrb[0].mxu0
        %v2806 = vadd.f32 %v1814, %v2805
        %v2807 = vpop.f32.mrb[0].mxu0
        %v2808 = vadd.f32 %v1814, %v2807
        %v2809 = vpop.f32.mrb[0].mxu0
        %v2810 = vadd.f32 %v1819, %v2809
        %v2811 = vpop.f32.mrb[0].mxu0
        %v2812 = vadd.f32 %v1819, %v2811
        %2813 = vmatprep.mubr.bf16.mxu0 %v2238
        %2814 = vmatmul.mubr.bf16.gmra.mrb[0].mxu0 %v2237
        %v2815 = vpop.f32.mrb[0].mxu0
        %v2816 = vadd.f32 %v1824, %v2815
        %v2817 = vpop.f32.mrb[0].mxu0
        %v2818 = vadd.f32 %v1824, %v2817
        %v2819 = vpop.f32.mrb[0].mxu0
        %v2820 = vadd.f32 %v1829, %v2819
        %v2821 = vpop.f32.mrb[0].mxu0
        %v2822 = vadd.f32 %v1829, %v2821
        %2823 = vmatprep.mubr.bf16.mxu0 %v2240
        %2824 = vmatmul.mubr.bf16.gmra.mrb[0].mxu0 %v2239
        %v2825 = vpop.f32.mrb[0].mxu0
        %v2826 = vadd.f32 %v1834, %v2825
        %v2827 = vpop.f32.mrb[0].mxu0
        %v2828 = vadd.f32 %v1834, %v2827
        %v2829 = vpop.f32.mrb[0].mxu0
        %v2830 = vadd.f32 %v1839, %v2829
        %v2831 = vpop.f32.mrb[0].mxu0
        %v2832 = vadd.f32 %v1839, %v2831
        %2833 = vmatprep.mubr.bf16.mxu0 %v2242
        %2834 = vmatmul.mubr.bf16.gmra.mrb[0].mxu0 %v2241
        %v2835 = vpop.f32.mrb[0].mxu0
        %v2836 = vadd.f32 %v1844, %v2835
        %v2837 = vpop.f32.mrb[0].mxu0
        %v2838 = vadd.f32 %v1844, %v2837
        %v2839 = vpop.f32.mrb[0].mxu0
        %v2840 = vadd.f32 %v1849, %v2839
        %v2841 = vpop.f32.mrb[0].mxu0
        %v2842 = vadd.f32 %v1849, %v2841
        %2843 = vmatprep.mubr.bf16.mxu0 %v2244
        %2844 = vmatmul.mubr.bf16.gmra.mrb[0].mxu0 %v2243
        %v2845 = vpop.f32.mrb[0].mxu0
        %v2846 = vadd.f32 %v1854, %v2845
        %v2847 = vpop.f32.mrb[0].mxu0
        %v2848 = vadd.f32 %v1854, %v2847
        %v2849 = vpop.f32.mrb[0].mxu0
        %v2850 = vadd.f32 %v1859, %v2849
        %v2851 = vpop.f32.mrb[0].mxu0
        %v2852 = vadd.f32 %v1859, %v2851
        %2853 = vdwg.mxu0
        %2854 = vst [vmem:[%s275] sm:$0xff] %v2376
        %2855 = vst [vmem:[%s275 + $0x8] sm:$0xff] %v2378
        %2856 = vst [vmem:[%s275 + $0x10] sm:$0xff] %v2380
        %2857 = vst [vmem:[%s275 + $0x18] sm:$0xff] %v2382
        %2858 = vst [vmem:[%s275 + $0x20] sm:$0xff] %v2386
        %2859 = vst [vmem:[%s275 + $0x28] sm:$0xff] %v2388
        %2860 = vst [vmem:[%s275 + $0x30] sm:$0xff] %v2390
        %2861 = vst [vmem:[%s275 + $0x38] sm:$0xff] %v2392
        %2862 = vst [vmem:[%s275 + $0x40] sm:$0xff] %v2396
        %2863 = vst [vmem:[%s275 + $0x48] sm:$0xff] %v2398
        %2864 = vst [vmem:[%s275 + $0x50] sm:$0xff] %v2400
        %2865 = vst [vmem:[%s275 + $0x58] sm:$0xff] %v2402
        %2866 = vst [vmem:[%s275 + $0x60] sm:$0xff] %v2406
        %2867 = vst [vmem:[%s275 + $0x68] sm:$0xff] %v2408
        %2868 = vst [vmem:[%s275 + $0x70] sm:$0xff] %v2410
        %2869 = vst [vmem:[%s275 + $0x78] sm:$0xff] %v2412
        %2870 = vst [vmem:[%s275 + $0x80] sm:$0xff] %v2416
        %2871 = vst [vmem:[%s275 + $0x88] sm:$0xff] %v2418
        %2872 = vst [vmem:[%s275 + $0x90] sm:$0xff] %v2420
        %2873 = vst [vmem:[%s275 + $0x98] sm:$0xff] %v2422
        %2874 = vst [vmem:[%s275 + $0xa0] sm:$0xff] %v2426
        %2875 = vst [vmem:[%s275 + $0xa8] sm:$0xff] %v2428
        %2876 = vst [vmem:[%s275 + $0xb0] sm:$0xff] %v2430
        %2877 = vst [vmem:[%s275 + $0xb8] sm:$0xff] %v2432
        %2878 = vst [vmem:[%s275 + $0xc0] sm:$0xff] %v2436
        %2879 = vst [vmem:[%s275 + $0xc8] sm:$0xff] %v2438
        %2880 = vst [vmem:[%s275 + $0xd0] sm:$0xff] %v2440
        %2881 = vst [vmem:[%s275 + $0xd8] sm:$0xff] %v2442
        %2882 = vst [vmem:[%s275 + $0xe0] sm:$0xff] %v2446
        %2883 = vst [vmem:[%s275 + $0xe8] sm:$0xff] %v2448
        %2884 = vst [vmem:[%s275 + $0xf0] sm:$0xff] %v2450
        %2885 = vst [vmem:[%s275 + $0xf8] sm:$0xff] %v2452
        %2886 = vst [vmem:[%s275 + $0x100] sm:$0xff] %v2456
        %2887 = vst [vmem:[%s275 + $0x108] sm:$0xff] %v2458
        %2888 = vst [vmem:[%s275 + $0x110] sm:$0xff] %v2460
        %2889 = vst [vmem:[%s275 + $0x118] sm:$0xff] %v2462
        %2890 = vst [vmem:[%s275 + $0x120] sm:$0xff] %v2466
        %2891 = vst [vmem:[%s275 + $0x128] sm:$0xff] %v2468
        %2892 = vst [vmem:[%s275 + $0x130] sm:$0xff] %v2470
        %2893 = vst [vmem:[%s275 + $0x138] sm:$0xff] %v2472
        %2894 = vst [vmem:[%s275 + $0x140] sm:$0xff] %v2476
        %2895 = vst [vmem:[%s275 + $0x148] sm:$0xff] %v2478
        %2896 = vst [vmem:[%s275 + $0x150] sm:$0xff] %v2480
        %2897 = vst [vmem:[%s275 + $0x158] sm:$0xff] %v2482
        %2898 = vst [vmem:[%s275 + $0x160] sm:$0xff] %v2486
        %2899 = vst [vmem:[%s275 + $0x168] sm:$0xff] %v2488
        %2900 = vst [vmem:[%s275 + $0x170] sm:$0xff] %v2490
        %2901 = vst [vmem:[%s275 + $0x178] sm:$0xff] %v2492
        %2902 = vst [vmem:[%s275 + $0x180] sm:$0xff] %v2496
        %2903 = vst [vmem:[%s275 + $0x188] sm:$0xff] %v2498
        %2904 = vst [vmem:[%s275 + $0x190] sm:$0xff] %v2500
        %2905 = vst [vmem:[%s275 + $0x198] sm:$0xff] %v2502
        %2906 = vst [vmem:[%s275 + $0x1a0] sm:$0xff] %v2506
        %2907 = vst [vmem:[%s275 + $0x1a8] sm:$0xff] %v2508
        %2908 = vst [vmem:[%s275 + $0x1b0] sm:$0xff] %v2510
        %2909 = vst [vmem:[%s275 + $0x1b8] sm:$0xff] %v2512
        %2910 = vst [vmem:[%s275 + $0x1c0] sm:$0xff] %v2516
        %2911 = vst [vmem:[%s275 + $0x1c8] sm:$0xff] %v2518
        %2912 = vst [vmem:[%s275 + $0x1d0] sm:$0xff] %v2520
        %2913 = vst [vmem:[%s275 + $0x1d8] sm:$0xff] %v2522
        %2914 = vst [vmem:[%s275 + $0x1e0] sm:$0xff] %v2526
        %2915 = vst [vmem:[%s275 + $0x1e8] sm:$0xff] %v2528
        %2916 = vst [vmem:[%s275 + $0x1f0] sm:$0xff] %v2530
        %2917 = vst [vmem:[%s275 + $0x1f8] sm:$0xff] %v2532
        %2918 = vst [vmem:[%s275 + $0x200] sm:$0xff] %v2536
        %2919 = vst [vmem:[%s275 + $0x208] sm:$0xff] %v2538
        %2920 = vst [vmem:[%s275 + $0x210] sm:$0xff] %v2540
        %2921 = vst [vmem:[%s275 + $0x218] sm:$0xff] %v2542
        %2922 = vst [vmem:[%s275 + $0x220] sm:$0xff] %v2546
        %2923 = vst [vmem:[%s275 + $0x228] sm:$0xff] %v2548
        %2924 = vst [vmem:[%s275 + $0x230] sm:$0xff] %v2550
        %2925 = vst [vmem:[%s275 + $0x238] sm:$0xff] %v2552
        %2926 = vst [vmem:[%s275 + $0x240] sm:$0xff] %v2556
        %2927 = vst [vmem:[%s275 + $0x248] sm:$0xff] %v2558
        %2928 = vst [vmem:[%s275 + $0x250] sm:$0xff] %v2560
        %2929 = vst [vmem:[%s275 + $0x258] sm:$0xff] %v2562
        %2930 = vst [vmem:[%s275 + $0x260] sm:$0xff] %v2566
        %2931 = vst [vmem:[%s275 + $0x268] sm:$0xff] %v2568
        %2932 = vst [vmem:[%s275 + $0x270] sm:$0xff] %v2570
        %2933 = vst [vmem:[%s275 + $0x278] sm:$0xff] %v2572
        %2934 = vst [vmem:[%s275 + $0x280] sm:$0xff] %v2576
        %2935 = vst [vmem:[%s275 + $0x288] sm:$0xff] %v2578
        %2936 = vst [vmem:[%s275 + $0x290] sm:$0xff] %v2580
        %2937 = vst [vmem:[%s275 + $0x298] sm:$0xff] %v2582
        %2938 = vst [vmem:[%s275 + $0x2a0] sm:$0xff] %v2586
        %2939 = vst [vmem:[%s275 + $0x2a8] sm:$0xff] %v2588
        %2940 = vst [vmem:[%s275 + $0x2b0] sm:$0xff] %v2590
        %2941 = vst [vmem:[%s275 + $0x2b8] sm:$0xff] %v2592
        %2942 = vst [vmem:[%s275 + $0x2c0] sm:$0xff] %v2596
        %2943 = vst [vmem:[%s275 + $0x2c8] sm:$0xff] %v2598
        %2944 = vst [vmem:[%s275 + $0x2d0] sm:$0xff] %v2600
        %2945 = vst [vmem:[%s275 + $0x2d8] sm:$0xff] %v2602
        %2946 = vst [vmem:[%s275 + $0x2e0] sm:$0xff] %v2606
        %2947 = vst [vmem:[%s275 + $0x2e8] sm:$0xff] %v2608
        %2948 = vst [vmem:[%s275 + $0x2f0] sm:$0xff] %v2610
        %2949 = vst [vmem:[%s275 + $0x2f8] sm:$0xff] %v2612
        %2950 = vst [vmem:[%s275 + $0x300] sm:$0xff] %v2616
        %2951 = vst [vmem:[%s275 + $0x308] sm:$0xff] %v2618
        %2952 = vst [vmem:[%s275 + $0x310] sm:$0xff] %v2620
        %2953 = vst [vmem:[%s275 + $0x318] sm:$0xff] %v2622
        %2954 = vst [vmem:[%s275 + $0x320] sm:$0xff] %v2626
        %2955 = vst [vmem:[%s275 + $0x328] sm:$0xff] %v2628
        %2956 = vst [vmem:[%s275 + $0x330] sm:$0xff] %v2630
        %2957 = vst [vmem:[%s275 + $0x338] sm:$0xff] %v2632
        %2958 = vst [vmem:[%s275 + $0x340] sm:$0xff] %v2636
        %2959 = vst [vmem:[%s275 + $0x348] sm:$0xff] %v2638
        %2960 = vst [vmem:[%s275 + $0x350] sm:$0xff] %v2640
        %2961 = vst [vmem:[%s275 + $0x358] sm:$0xff] %v2642
        %2962 = vst [vmem:[%s275 + $0x360] sm:$0xff] %v2646
        %2963 = vst [vmem:[%s275 + $0x368] sm:$0xff] %v2648
        %2964 = vst [vmem:[%s275 + $0x370] sm:$0xff] %v2650
        %2965 = vst [vmem:[%s275 + $0x378] sm:$0xff] %v2652
        %2966 = vst [vmem:[%s275 + $0x380] sm:$0xff] %v2656
        %2967 = vst [vmem:[%s275 + $0x388] sm:$0xff] %v2658
        %2968 = vst [vmem:[%s275 + $0x390] sm:$0xff] %v2660
        %2969 = vst [vmem:[%s275 + $0x398] sm:$0xff] %v2662
        %2970 = vst [vmem:[%s275 + $0x3a0] sm:$0xff] %v2666
        %2971 = vst [vmem:[%s275 + $0x3a8] sm:$0xff] %v2668
        %2972 = vst [vmem:[%s275 + $0x3b0] sm:$0xff] %v2670
        %2973 = vst [vmem:[%s275 + $0x3b8] sm:$0xff] %v2672
        %2974 = vst [vmem:[%s275 + $0x3c0] sm:$0xff] %v2676
        %2975 = vst [vmem:[%s275 + $0x3c8] sm:$0xff] %v2678
        %2976 = vst [vmem:[%s275 + $0x3d0] sm:$0xff] %v2680
        %2977 = vst [vmem:[%s275 + $0x3d8] sm:$0xff] %v2682
        %2978 = vst [vmem:[%s275 + $0x3e0] sm:$0xff] %v2686
        %2979 = vst [vmem:[%s275 + $0x3e8] sm:$0xff] %v2688
        %2980 = vst [vmem:[%s275 + $0x3f0] sm:$0xff] %v2690
        %2981 = vst [vmem:[%s275 + $0x3f8] sm:$0xff] %v2692
        %2982 = vst [vmem:[%s275 + $0x400] sm:$0xff] %v2696
        %2983 = vst [vmem:[%s275 + $0x408] sm:$0xff] %v2698
        %2984 = vst [vmem:[%s275 + $0x410] sm:$0xff] %v2700
        %2985 = vst [vmem:[%s275 + $0x418] sm:$0xff] %v2702
        %2986 = vst [vmem:[%s275 + $0x420] sm:$0xff] %v2706
        %2987 = vst [vmem:[%s275 + $0x428] sm:$0xff] %v2708
        %2988 = vst [vmem:[%s275 + $0x430] sm:$0xff] %v2710
        %2989 = vst [vmem:[%s275 + $0x438] sm:$0xff] %v2712
        %2990 = vst [vmem:[%s275 + $0x440] sm:$0xff] %v2716
        %2991 = vst [vmem:[%s275 + $0x448] sm:$0xff] %v2718
        %2992 = vst [vmem:[%s275 + $0x450] sm:$0xff] %v2720
        %2993 = vst [vmem:[%s275 + $0x458] sm:$0xff] %v2722
        %2994 = vst [vmem:[%s275 + $0x460] sm:$0xff] %v2726
        %2995 = vst [vmem:[%s275 + $0x468] sm:$0xff] %v2728
        %2996 = vst [vmem:[%s275 + $0x470] sm:$0xff] %v2730
        %2997 = vst [vmem:[%s275 + $0x478] sm:$0xff] %v2732
        %2998 = vst [vmem:[%s275 + $0x480] sm:$0xff] %v2736
        %2999 = vst [vmem:[%s275 + $0x488] sm:$0xff] %v2738
        %3000 = vst [vmem:[%s275 + $0x490] sm:$0xff] %v2740
        %3001 = vst [vmem:[%s275 + $0x498] sm:$0xff] %v2742
        %3002 = vst [vmem:[%s275 + $0x4a0] sm:$0xff] %v2746
        %3003 = vst [vmem:[%s275 + $0x4a8] sm:$0xff] %v2748
        %3004 = vst [vmem:[%s275 + $0x4b0] sm:$0xff] %v2750
        %3005 = vst [vmem:[%s275 + $0x4b8] sm:$0xff] %v2752
        %3006 = vst [vmem:[%s275 + $0x4c0] sm:$0xff] %v2756
        %3007 = vst [vmem:[%s275 + $0x4c8] sm:$0xff] %v2758
        %3008 = vst [vmem:[%s275 + $0x4d0] sm:$0xff] %v2760
        %3009 = vst [vmem:[%s275 + $0x4d8] sm:$0xff] %v2762
        %3010 = vst [vmem:[%s275 + $0x4e0] sm:$0xff] %v2766
        %3011 = vst [vmem:[%s275 + $0x4e8] sm:$0xff] %v2768
        %3012 = vst [vmem:[%s275 + $0x4f0] sm:$0xff] %v2770
        %3013 = vst [vmem:[%s275 + $0x4f8] sm:$0xff] %v2772
        %3014 = vst [vmem:[%s275 + $0x500] sm:$0xff] %v2776
        %3015 = vst [vmem:[%s275 + $0x508] sm:$0xff] %v2778
        %3016 = vst [vmem:[%s275 + $0x510] sm:$0xff] %v2780
        %3017 = vst [vmem:[%s275 + $0x518] sm:$0xff] %v2782
        %3018 = vst [vmem:[%s275 + $0x520] sm:$0xff] %v2786
        %3019 = vst [vmem:[%s275 + $0x528] sm:$0xff] %v2788
        %3020 = vst [vmem:[%s275 + $0x530] sm:$0xff] %v2790
        %3021 = vst [vmem:[%s275 + $0x538] sm:$0xff] %v2792
        %3022 = vst [vmem:[%s275 + $0x540] sm:$0xff] %v2796
        %3023 = vst [vmem:[%s275 + $0x548] sm:$0xff] %v2798
        %3024 = vst [vmem:[%s275 + $0x550] sm:$0xff] %v2800
        %3025 = vst [vmem:[%s275 + $0x558] sm:$0xff] %v2802
        %3026 = vst [vmem:[%s275 + $0x560] sm:$0xff] %v2806
        %3027 = vst [vmem:[%s275 + $0x568] sm:$0xff] %v2808
        %3028 = vst [vmem:[%s275 + $0x570] sm:$0xff] %v2810
        %3029 = vst [vmem:[%s275 + $0x578] sm:$0xff] %v2812
        %3030 = vst [vmem:[%s275 + $0x580] sm:$0xff] %v2816
        %3031 = vst [vmem:[%s275 + $0x588] sm:$0xff] %v2818
        %3032 = vst [vmem:[%s275 + $0x590] sm:$0xff] %v2820
        %3033 = vst [vmem:[%s275 + $0x598] sm:$0xff] %v2822
        %3034 = vst [vmem:[%s275 + $0x5a0] sm:$0xff] %v2826
        %3035 = vst [vmem:[%s275 + $0x5a8] sm:$0xff] %v2828
        %3036 = vst [vmem:[%s275 + $0x5b0] sm:$0xff] %v2830
        %3037 = vst [vmem:[%s275 + $0x5b8] sm:$0xff] %v2832
        %3038 = vst [vmem:[%s275 + $0x5c0] sm:$0xff] %v2836
        %3039 = vst [vmem:[%s275 + $0x5c8] sm:$0xff] %v2838
        %3040 = vst [vmem:[%s275 + $0x5d0] sm:$0xff] %v2840
        %3041 = vst [vmem:[%s275 + $0x5d8] sm:$0xff] %v2842
        %3042 = vst [vmem:[%s275 + $0x5e0] sm:$0xff] %v2846
        %3043 = vst [vmem:[%s275 + $0x5e8] sm:$0xff] %v2848
        %3044 = vst [vmem:[%s275 + $0x5f0] sm:$0xff] %v2850
        %3045 = vst [vmem:[%s275 + $0x5f8] sm:$0xff] %v2852
        %s3046 = sand.u32 %s157, 1
        %s3047 = scalar_lea.sflag [#allocation4], %s3046
        %s3048 = sand.u32 %s157, 1
        %s3049 = smul.addr %s3048, 1536
        %s3050 = scalar_lea.vmem [#allocation7], %s3049
        // Predicated region
        $region49: #{tpu_custom_call.1} parent=39 // pred_check
          %p3051 = pneg %p167
        $region50: #{tpu_custom_call.1} parent=39 // pred_check_branch
          %3053 = sbr.rel (%p3051) target = $region52
        $region51: #{tpu_custom_call.1} parent=39 // pred_region
          %s3054 = smul.u32 2, %s28
          %s3056 = ssub.s32 24576, 24576
          %3057 = vsyncadd %s3047, %s3056
          %s3058 = smul.addr %s27, 192
          %s3059 = sadd.s32 %s3054, %s3058
          %s3060 = smul.addr %s3059, 128
          %s3061 = scalar_lea.hbm %s5, %s3060
          %s3062 = sshll.u32 %s3050, 4
          %s3063 = int_to_ptr.vmem [resolvable:$true] %s3062
          %3068 = dma.vmem_to_hbm [thread:$0]  %s3063, 24576, %s3061, %s3047, 256, 256, 16
        $region52: #{tpu_custom_call.1} parent=39 // pred_fallthru
          _
      $region40: #{tpu_custom_call.1} parent=5 // pred_fallthru
        _
      %p3069 = scmp.le.s32.totalorder 2, %s18
      // Predicated region
      $region53: #{tpu_custom_call.1} parent=5 // pred_check
        %p3070 = pneg %p3069
      $region54: #{tpu_custom_call.1} parent=5 // pred_check_branch
        %3072 = sbr.rel (%p3070) target = $region56
      $region55: #{tpu_custom_call.1} parent=5 // pred_region
        %s3073 = ssub.s32 %s18, 2
        // Predicated region
        $region57: #{tpu_custom_call.1} parent=55 // pred_check
          %p3074 = pneg %p173
        $region58: #{tpu_custom_call.1} parent=55 // pred_check_branch
          %3076 = sbr.rel (%p3074) target = $region60
        $region59: #{tpu_custom_call.1} parent=55 // pred_region
          %s3077 = sand.u32 %s158, 1
          %s3078 = scalar_lea.sflag [#allocation4], %s3077
          %s3079 = sand.u32 %s158, 1
          %s3080 = smul.addr %s3079, 1536
          %s3081 = scalar_lea.vmem [#allocation7], %s3080
          %3082 = dma.done %s3078, 24576
        $region60: #{tpu_custom_call.1} parent=55 // pred_fallthru
          _
      $region56: #{tpu_custom_call.1} parent=5 // pred_fallthru
        _
    $region6: #{tpu_custom_call.1} parent=1 // loop_footer
      %s22 = sadd.s32 1, %s18
    $region7: #{tpu_custom_call.1} parent=1 // loop_footer_branch
      %17 = sbr.rel target = $region3
    $region8: #{tpu_custom_call.1} parent=1 // loop_exit
      _
    %3083 = vsyncpa [#allocation3], 1
    %s3084 = scalar_lea.sflag [#allocation3], 1
    %3085 = vsyncpa %s3084, 1
    %3086 = vsyncpa [#allocation6], 1
    %3087 = vsyncpa [#allocation4], 1
    %s3088 = scalar_lea.sflag [#allocation4], 1
    %3089 = vsyncpa %s3088, 1

</llo_original>
